<compile_context>
chip_gen: v7x
topology: tpu7x:2x2x1
jax: 0.10.0
libtpu: 0.0.40
codegen_flags: <defaults>
</compile_context>

<pallas_src>
import functools

import jax
import jax.numpy as jnp
from jax.experimental import pallas as pl
from jax.experimental.pallas import tpu as pltpu

LANE = 128                  # channel / node padding target (vreg lane width)
TM_CAP = 512                # max output-node (row) tile
TK_CAP = 2048               # max reduction tile over A_hat columns
XW_RESIDENT_BYTES = 12 << 20  # keep XW fully VMEM-resident below this size
LN_EPS = 1e-5               # torch.nn.LayerNorm default


def _round_up(v, m):
    return (v + m - 1) // m * m


def _choose_tiles(n_pad):
    """Pick (row tile, reduction tile) adaptively.  n_pad is a multiple of 128.
    tk: largest multiple of 128 dividing n_pad, capped at TK_CAP.
    tm: largest multiple of 8 dividing n_pad, capped at TM_CAP, with
        n_pad // tm >= 2 so the 'parallel' axis can shard across v7x's 2 TCs."""
    tk = 128
    for cand in range(min(TK_CAP, n_pad), 127, -128):
        if n_pad % cand == 0:
            tk = cand
            break
    cap = min(TM_CAP, n_pad // 2)
    cap = max(cap - cap % 8, 8)
    tm = 8
    for cand in range(cap, 7, -8):
        if n_pad % cand == 0:
            tm = cand
            break
    return tm, tk


# ---------------------------------------------------------------------------
# Kernel 1: feature transform  XW = X @ W   (row-tiled, weight resident)
# ---------------------------------------------------------------------------
def _xw_kernel(x_ref, w_ref, o_ref):
    o_ref[...] = jnp.dot(x_ref[...], w_ref[...],
                         preferred_element_type=jnp.float32).astype(o_ref.dtype)


def feature_transform(x, w, *, tm):
    n_pad, c_in = x.shape
    c_out = w.shape[1]
    grid = (n_pad // tm,)

    vmem_est = (2 * tm * c_in * 2        # X row tiles (double-buffered, bf16)
                + 2 * c_in * c_out * 2   # W (resident, bf16)
                + 2 * tm * c_out * 2)    # output tiles (bf16)
    vmem_limit = min(max(vmem_est + (4 << 20), 16 << 20), 60 << 20)

    cost = pl.CostEstimate(
        flops=2 * n_pad * c_in * c_out,
        transcendentals=0,
        bytes_accessed=n_pad * c_in * 2 + c_in * c_out * 2 + n_pad * c_out * 2,
    )

    return pl.pallas_call(
        _xw_kernel,
        out_shape=jax.ShapeDtypeStruct((n_pad, c_out), jnp.bfloat16),
        grid_spec=pltpu.PrefetchScalarGridSpec(
            num_scalar_prefetch=0,
            grid=grid,
            in_specs=[
                pl.BlockSpec((tm, c_in), lambda i: (i, 0)),      # X row tile
                pl.BlockSpec((c_in, c_out), lambda i: (0, 0)),   # W (resident)
            ],
            out_specs=pl.BlockSpec((tm, c_out), lambda i: (i, 0)),
        ),
        compiler_params=pltpu.CompilerParams(
            dimension_semantics=("parallel",),
            vmem_limit_bytes=vmem_limit,
        ),
        cost_estimate=cost,
    )(x, w)


# ---------------------------------------------------------------------------
# Kernel 2: fused aggregation + bias + LayerNorm + ReLU
#   H = A_hat @ XW + b ; H = LayerNorm(H) ; out = relu(H)
# ---------------------------------------------------------------------------
def _agg_ln_relu_kernel(a_ref, xw_ref, s_ref, o_ref, acc_ref,
                        *, c_real, tk, resident):
    k = pl.program_id(1)

    @pl.when(k == 0)
    def _init():
        acc_ref[...] = jnp.zeros_like(acc_ref)

    if resident:
        start = pl.multiple_of(k * tk, tk)
        xw = xw_ref[pl.ds(start, tk), :]      # slice the resident XW slab
    else:
        xw = xw_ref[...]                      # streamed slab
    acc_ref[...] += jnp.dot(a_ref[...], xw, preferred_element_type=jnp.float32)

    @pl.when(k == pl.num_programs(1) - 1)
    def _epilogue():
        s = s_ref[...]                        # packed (8, C): bias/gamma/beta
        bias, gamma, beta = s[0:1, :], s[1:2, :], s[2:3, :]
        h = acc_ref[...] + bias
        # LayerNorm over the real channels only; padded columns of h are 0
        # (W/b zero-padded).  Two-pass (masked) variance for better numerics.
        inv_c = 1.0 / c_real
        mean = jnp.sum(h, axis=-1, keepdims=True) * inv_c
        col = jax.lax.broadcasted_iota(jnp.int32, (1, h.shape[-1]), 1)
        mask = (col < c_real).astype(jnp.float32)
        hc = (h - mean) * mask
        var = jnp.sum(hc * hc, axis=-1, keepdims=True) * inv_c
        hn = hc * jax.lax.rsqrt(var + LN_EPS)
        hn = hn * gamma + beta                # gamma/beta zero-padded -> pads stay 0
        o_ref[...] = jnp.maximum(hn, 0.0).astype(o_ref.dtype)   # ReLU


def gcn_agg_ln_relu(a_hat, xw, scales, *, c_real, out_dtype, tm, tk):
    """Fused A_hat @ XW + bias + LayerNorm + ReLU; all inputs already padded."""
    n_pad = a_hat.shape[0]
    c_out = xw.shape[1]
    grid = (n_pad // tm, n_pad // tk)

    resident = (n_pad * c_out * 2) <= XW_RESIDENT_BYTES
    out_itemsize = jnp.dtype(out_dtype).itemsize

    vmem_est = (2 * tm * tk * 2                                   # A_hat tiles
                + (2 * n_pad * c_out * 2 if resident
                   else 2 * tk * c_out * 2)                       # XW
                + 2 * 8 * c_out * 4                               # packed scales
                + 2 * tm * c_out * out_itemsize                   # output tiles
                + tm * c_out * 4)                                 # f32 accumulator
    vmem_limit = min(max(vmem_est + (4 << 20), 16 << 20), 60 << 20)

    cost = pl.CostEstimate(
        flops=2 * n_pad * n_pad * c_out,
        transcendentals=n_pad,
        bytes_accessed=(a_hat.size * 2
                        + n_pad * c_out * 2 * (1 if resident else grid[0])
                        + scales.size * 4
                        + n_pad * c_out * out_itemsize),
    )

    if resident:
        xw_spec = pl.BlockSpec((n_pad, c_out), lambda i, k: (0, 0))
    else:
        xw_spec = pl.BlockSpec((tk, c_out), lambda i, k: (k, 0))

    kernel = functools.partial(_agg_ln_relu_kernel,
                               c_real=c_real, tk=tk, resident=resident)
    return pl.pallas_call(
        kernel,
        out_shape=jax.ShapeDtypeStruct((n_pad, c_out), out_dtype),
        grid_spec=pltpu.PrefetchScalarGridSpec(
            num_scalar_prefetch=0,
            grid=grid,
            in_specs=[
                pl.BlockSpec((tm, tk), lambda i, k: (i, k)),      # A_hat tile
                xw_spec,                                          # XW (resident or slab)
                pl.BlockSpec((8, c_out), lambda i, k: (0, 0)),    # bias/gamma/beta
            ],
            out_specs=pl.BlockSpec((tm, c_out), lambda i, k: (i, 0)),
            scratch_shapes=[pltpu.VMEM((tm, c_out), jnp.float32)],
        ),
        compiler_params=pltpu.CompilerParams(
            dimension_semantics=("parallel", "arbitrary"),
            vmem_limit_bytes=vmem_limit,
        ),
        cost_estimate=cost,
    )(a_hat, xw, scales)


# ---------------------------------------------------------------------------
# Graph preprocessing (plain JAX glue, hoisted out of the per-call forward)
# ---------------------------------------------------------------------------
def build_normalized_adjacency(edge_index, num_nodes):
    """Dense \\hat{A} = D^{-1/2} (A + self_loops) D^{-1/2}, PyG gcn_norm style:
    duplicate edges accumulate; self-loops only added for nodes lacking one."""
    src, dst = edge_index[0], edge_index[1]
    a = jnp.zeros((num_nodes, num_nodes), jnp.float32)
    a = a.at[dst, src].add(1.0)                          # message flows src -> dst
    idx = jnp.arange(num_nodes)
    diag = a[idx, idx]
    a = a.at[idx, idx].set(jnp.where(diag > 0, diag, 1.0))   # add_remaining_self_loops
    deg = jnp.sum(a, axis=1)
    dinv = jnp.where(deg > 0, jax.lax.rsqrt(deg), 0.0)
    return dinv[:, None] * a * dinv[None, :]


def prepare_graph(edge_index, num_nodes):
    """Once per graph: normalized adjacency, padded to a multiple of 128 lanes
    (adaptive — no fixed 512 blowup for small graphs), cast to bf16."""
    a = build_normalized_adjacency(edge_index, num_nodes)
    n_pad = _round_up(num_nodes, LANE)
    a = jnp.pad(a, ((0, n_pad - num_nodes), (0, n_pad - num_nodes)))
    return a.astype(jnp.bfloat16)


# ---------------------------------------------------------------------------
# Parameters
# ---------------------------------------------------------------------------
def glorot(key, shape):
    fan_in, fan_out = shape
    lim = jnp.sqrt(6.0 / (fan_in + fan_out))
    return jax.random.uniform(key, shape, jnp.float32, -lim, lim)


def init_encoder_params(key, in_channels, out_channels):
    """Logical (unpadded) parameters matching the torch module."""
    k0, k1 = jax.random.split(key)
    hidden = 2 * out_channels
    return {
        "w0": glorot(k0, (in_channels, hidden)),
        "b0": jnp.zeros((hidden,), jnp.float32),
        "g1": jnp.ones((hidden,), jnp.float32),
        "beta1": jnp.zeros((hidden,), jnp.float32),
        "w1": glorot(k1, (hidden, out_channels)),
        "b1": jnp.zeros((out_channels,), jnp.float32),
        "g2": jnp.ones((out_channels,), jnp.float32),
        "beta2": jnp.zeros((out_channels,), jnp.float32),
    }


def _pack_scales(bias, gamma, beta, c_pad):
    """Pack bias/gamma/beta into one (8, c_pad) f32 operand (rows 0..2 used).
    Zero padding keeps padded feature columns exactly 0 through LN + ReLU."""
    s = jnp.zeros((8, c_pad), jnp.float32)
    s = s.at[0, :bias.shape[0]].set(bias)
    s = s.at[1, :gamma.shape[0]].set(gamma)
    s = s.at[2, :beta.shape[0]].set(beta)
    return s


def pad_encoder_params(params, in_channels, out_channels):
    """Zero-pad channel dims to 128 lanes; weights bf16, LN/bias params f32."""
    hidden = 2 * out_channels
    cin_p = _round_up(in_channels, LANE)
    hid_p = _round_up(hidden, LANE)
    out_p = _round_up(out_channels, LANE)
    pad_w = lambda w, r, c: jnp.pad(w, ((0, r - w.shape[0]), (0, c - w.shape[1])))
    return {
        "w0": pad_w(params["w0"], cin_p, hid_p).astype(jnp.bfloat16),
        "s1": _pack_scales(params["b0"], params["g1"], params["beta1"], hid_p),
        "w1": pad_w(params["w1"], hid_p, out_p).astype(jnp.bfloat16),
        "s2": _pack_scales(params["b1"], params["g2"], params["beta2"], out_p),
    }


# ---------------------------------------------------------------------------
# Forward
# ---------------------------------------------------------------------------
@functools.partial(jax.jit, static_argnames=("in_channels", "out_channels"))
def encoder_forward(padded_params, x, a_hat_pad, *, in_channels, out_channels):
    """Eval-mode forward: F.dropout is identity; activation = ReLU."""
    n = x.shape[0]
    n_pad = a_hat_pad.shape[0]
    hidden = 2 * out_channels
    cin_p = _round_up(in_channels, LANE)
    tm, tk = _choose_tiles(n_pad)

    xp = jnp.pad(x, ((0, n_pad - n), (0, cin_p - in_channels))).astype(jnp.bfloat16)

    # TODO(synk): training-mode dropout (RNG masks) intentionally not implemented.
    xw1 = feature_transform(xp, padded_params["w0"], tm=tm)
    h1 = gcn_agg_ln_relu(a_hat_pad, xw1, padded_params["s1"],
                         c_real=hidden, out_dtype=jnp.bfloat16, tm=tm, tk=tk)
    xw2 = feature_transform(h1, padded_params["w1"], tm=tm)
    h2 = gcn_agg_ln_relu(a_hat_pad, xw2, padded_params["s2"],
                         c_real=out_channels, out_dtype=jnp.float32, tm=tm, tk=tk)
    return h2[:n, :out_channels]


if __name__ == "__main__":
    key = jax.random.PRNGKey(0)
    kx, ke, kp = jax.random.split(key, 3)

    num_nodes = 32
    in_channels = 16
    out_channels = 8
    num_edges = 64

    x = jax.random.normal(kx, (num_nodes, in_channels), jnp.float32)
    edge_index = jax.random.randint(ke, (2, num_edges), 0, num_nodes, jnp.int32)

    params = init_encoder_params(kp, in_channels, out_channels)
    padded_params = pad_encoder_params(params, in_channels, out_channels)
    a_hat_pad = prepare_graph(edge_index, num_nodes)   # hoisted: once per graph

    out = encoder_forward(padded_params, x, a_hat_pad,
                          in_channels=in_channels, out_channels=out_channels)
    jax.block_until_ready(out)

    assert out.shape == (num_nodes, out_channels)
    assert bool(jnp.all(jnp.isfinite(out)))
    print("KERNEL_OK")
</pallas_src>

<mosaic_0001>
module attributes {stable_mosaic.version = 11 : i64} {
  func.func @_xw_kernel(%arg0: i32, %arg1: memref<64x128xbf16, #tpu.memory_space<vmem>>, %arg2: memref<128x128xbf16, #tpu.memory_space<vmem>>, %arg3: memref<64x128xbf16, #tpu.memory_space<vmem>>) attributes {dimension_semantics = [#tpu.dimension_semantics<parallel>], iteration_bounds = array<i64: 2>, scalar_prefetch = 0 : i64, scratch_operands = 0 : i64, tpu.core_type = #tpu.core_type<tc>, window_params = [{transform_indices = @transform_0, window_bounds = array<i64: 64, 128>}, {pipeline_mode = #tpu.pipeline_mode<synchronous>, transform_indices = @transform_1, window_bounds = array<i64: 128, 128>}, {transform_indices = @transform_2, window_bounds = array<i64: 64, 128>}]} {
    %c0 = arith.constant 0 : index
    %c0_0 = arith.constant 0 : index
    %0 = vector.load %arg1[%c0, %c0_0] : memref<64x128xbf16, #tpu.memory_space<vmem>>, vector<64x128xbf16>
    %c0_1 = arith.constant 0 : index
    %c0_2 = arith.constant 0 : index
    %1 = vector.load %arg2[%c0_1, %c0_2] : memref<128x128xbf16, #tpu.memory_space<vmem>>, vector<128x128xbf16>
    %cst = arith.constant dense<0.000000e+00> : vector<64x128xf32>
    %2 = tpu.matmul %0, %1, %cst {dimension_numbers = #tpu.dot_dimension_numbers<[1], [0], [0], [1], [0, 0, 1, 1], [], []>} : vector<64x128xbf16>, vector<128x128xbf16>, vector<64x128xf32> -> vector<64x128xf32>
    %3 = arith.truncf %2 : vector<64x128xf32> to vector<64x128xbf16>
    %c0_3 = arith.constant 0 : index
    %c0_4 = arith.constant 0 : index
    %4 = vector.load %arg3[%c0_3, %c0_4] : memref<64x128xbf16, #tpu.memory_space<vmem>>, vector<64x128xbf16>
    tpu.vector_store %arg3[%c0_3, %c0_4], %3 {strides = array<i32>} : memref<64x128xbf16, #tpu.memory_space<vmem>>, vector<64x128xbf16>,
    return
  }
  func.func @transform_0(%arg0: i32) -> (i32, i32) {
    %c0_i32 = arith.constant 0 : i32
    %c0_i32_0 = arith.constant 0 : i32
    return %arg0, %c0_i32 : i32, i32
  }
  func.func @transform_1(%arg0: i32) -> (i32, i32) {
    %c0_i32 = arith.constant 0 : i32
    %c0_i32_0 = arith.constant 0 : i32
    %c0_i32_1 = arith.constant 0 : i32
    return %c0_i32, %c0_i32_0 : i32, i32
  }
  func.func @transform_2(%arg0: i32) -> (i32, i32) {
    %c0_i32 = arith.constant 0 : i32
    %c0_i32_0 = arith.constant 0 : i32
    return %arg0, %c0_i32 : i32, i32
  }
}

module attributes {stable_mosaic.version = 11 : i64} {
  func.func @_agg_ln_relu_kernel(%arg0: i32, %arg1: i32, %arg2: memref<64x128xbf16, #tpu.memory_space<vmem>>, %arg3: memref<128x128xbf16, #tpu.memory_space<vmem>>, %arg4: memref<8x128xf32, #tpu.memory_space<vmem>>, %arg5: memref<64x128xbf16, #tpu.memory_space<vmem>>, %arg6: memref<64x128xf32, #tpu.memory_space<vmem>>) attributes {dimension_semantics = [#tpu.dimension_semantics<parallel>, #tpu.dimension_semantics<arbitrary>], iteration_bounds = array<i64: 2, 1>, scalar_prefetch = 0 : i64, scratch_operands = 1 : i64, tpu.core_type = #tpu.core_type<tc>, window_params = [{transform_indices = @transform_0, window_bounds = array<i64: 64, 128>}, {pipeline_mode = #tpu.pipeline_mode<synchronous>, transform_indices = @transform_1, window_bounds = array<i64: 128, 128>}, {pipeline_mode = #tpu.pipeline_mode<synchronous>, transform_indices = @transform_2, window_bounds = array<i64: 8, 128>}, {transform_indices = @transform_3, window_bounds = array<i64: 64, 128>}]} {
    %c0_i32 = arith.constant 0 : i32
    %0 = arith.cmpi eq, %arg1, %c0_i32 : i32
    %1 = arith.extui %0 : i1 to i32
    %c0_i32_0 = arith.constant 0 : i32
    %2 = arith.cmpi ne, %1, %c0_i32_0 : i32
    scf.if %2 {
      %cst_9 = arith.constant 0.000000e+00 : f32
      %15 = vector.broadcast %cst_9 : f32 to vector<64x128xf32>
      %c0_10 = arith.constant 0 : index
      %c0_11 = arith.constant 0 : index
      %16 = vector.load %arg6[%c0_10, %c0_11] : memref<64x128xf32, #tpu.memory_space<vmem>>, vector<64x128xf32>
      tpu.vector_store %arg6[%c0_10, %c0_11], %15 {strides = array<i32>} : memref<64x128xf32, #tpu.memory_space<vmem>>, vector<64x128xf32>,
    } else {
    }
    %c128_i32 = arith.constant 128 : i32
    %3 = arith.muli %arg1, %c128_i32 : i32
    %4 = tpu.assume_multiple %3, 128 : i32
    %5 = arith.index_cast %4 : i32 to index
    %c0 = arith.constant 0 : index
    %6 = vector.load %arg3[%5, %c0] : memref<128x128xbf16, #tpu.memory_space<vmem>>, vector<128x128xbf16>
    %c0_1 = arith.constant 0 : index
    %c0_2 = arith.constant 0 : index
    %7 = vector.load %arg6[%c0_1, %c0_2] : memref<64x128xf32, #tpu.memory_space<vmem>>, vector<64x128xf32>
    %c0_3 = arith.constant 0 : index
    %c0_4 = arith.constant 0 : index
    %8 = vector.load %arg2[%c0_3, %c0_4] : memref<64x128xbf16, #tpu.memory_space<vmem>>, vector<64x128xbf16>
    %cst = arith.constant dense<0.000000e+00> : vector<64x128xf32>
    %9 = tpu.matmul %8, %6, %cst {dimension_numbers = #tpu.dot_dimension_numbers<[1], [0], [0], [1], [0, 0, 1, 1], [], []>} : vector<64x128xbf16>, vector<128x128xbf16>, vector<64x128xf32> -> vector<64x128xf32>
    %10 = arith.addf %7, %9 : vector<64x128xf32>
    %c0_5 = arith.constant 0 : index
    %c0_6 = arith.constant 0 : index
    %11 = vector.load %arg6[%c0_5, %c0_6] : memref<64x128xf32, #tpu.memory_space<vmem>>, vector<64x128xf32>
    tpu.vector_store %arg6[%c0_5, %c0_6], %10 {strides = array<i32>} : memref<64x128xf32, #tpu.memory_space<vmem>>, vector<64x128xf32>,
    %c0_i32_7 = arith.constant 0 : i32
    %12 = arith.cmpi eq, %arg1, %c0_i32_7 : i32
    %13 = arith.extui %12 : i1 to i32
    %c0_i32_8 = arith.constant 0 : i32
    %14 = arith.cmpi ne, %13, %c0_i32_8 : i32
    scf.if %14 {
      %c0_9 = arith.constant 0 : index
      %c0_10 = arith.constant 0 : index
      %15 = vector.load %arg4[%c0_9, %c0_10] : memref<8x128xf32, #tpu.memory_space<vmem>>, vector<8x128xf32>
      %16 = vector.extract_strided_slice %15 {offsets = [0, 0], sizes = [1, 128], strides = [1, 1]} : vector<8x128xf32> to vector<1x128xf32>
      %17 = vector.extract_strided_slice %15 {offsets = [1, 0], sizes = [1, 128], strides = [1, 1]} : vector<8x128xf32> to vector<1x128xf32>
      %18 = vector.extract_strided_slice %15 {offsets = [2, 0], sizes = [1, 128], strides = [1, 1]} : vector<8x128xf32> to vector<1x128xf32>
      %c0_11 = arith.constant 0 : index
      %c0_12 = arith.constant 0 : index
      %19 = vector.load %arg6[%c0_11, %c0_12] : memref<64x128xf32, #tpu.memory_space<vmem>>, vector<64x128xf32>
      %20 = vector.broadcast %16 : vector<1x128xf32> to vector<64x128xf32>
      %21 = arith.addf %19, %20 : vector<64x128xf32>
      %cst_13 = arith.constant dense<0.000000e+00> : vector<64xf32>
      %22 = vector.multi_reduction <add>, %21, %cst_13 [1] : vector<64x128xf32> to vector<64xf32>
      %23 = vector.shape_cast %22 : vector<64xf32> to vector<64x1xf32>
      %cst_14 = arith.constant 6.250000e-02 : f32
      %24 = vector.broadcast %cst_14 : f32 to vector<64x1xf32>
      %25 = arith.mulf %23, %24 : vector<64x1xf32>
      %26 = tpu.iota {dimensions = array<i32: 1>} : vector<1x128xi32>
      %c16_i32 = arith.constant 16 : i32
      %27 = vector.broadcast %c16_i32 : i32 to vector<1x128xi32>
      %28 = arith.cmpi slt, %26, %27 : vector<1x128xi32>
      %29 = arith.extui %28 : vector<1x128xi1> to vector<1x128xi32>
      %30 = arith.sitofp %29 : vector<1x128xi32> to vector<1x128xf32>
      %31 = vector.broadcast %25 : vector<64x1xf32> to vector<64x128xf32>
      %32 = arith.subf %21, %31 : vector<64x128xf32>
      %33 = vector.broadcast %30 : vector<1x128xf32> to vector<64x128xf32>
      %34 = arith.mulf %32, %33 : vector<64x128xf32>
      %35 = arith.mulf %34, %34 : vector<64x128xf32>
      %cst_15 = arith.constant dense<0.000000e+00> : vector<64xf32>
      %36 = vector.multi_reduction <add>, %35, %cst_15 [1] : vector<64x128xf32> to vector<64xf32>
      %37 = vector.shape_cast %36 : vector<64xf32> to vector<64x1xf32>
      %cst_16 = arith.constant 6.250000e-02 : f32
      %38 = vector.broadcast %cst_16 : f32 to vector<64x1xf32>
      %39 = arith.mulf %37, %38 : vector<64x1xf32>
      %cst_17 = arith.constant 9.99999974E-6 : f32
      %40 = vector.broadcast %cst_17 : f32 to vector<64x1xf32>
      %41 = arith.addf %39, %40 : vector<64x1xf32>
      %42 = math.rsqrt %41 : vector<64x1xf32>
      %43 = vector.broadcast %42 : vector<64x1xf32> to vector<64x128xf32>
      %44 = arith.mulf %34, %43 : vector<64x128xf32>
      %45 = vector.broadcast %17 : vector<1x128xf32> to vector<64x128xf32>
      %46 = arith.mulf %44, %45 : vector<64x128xf32>
      %47 = vector.broadcast %18 : vector<1x128xf32> to vector<64x128xf32>
      %48 = arith.addf %46, %47 : vector<64x128xf32>
      %cst_18 = arith.constant 0.000000e+00 : f32
      %49 = vector.broadcast %cst_18 : f32 to vector<64x128xf32>
      %50 = arith.maximumf %48, %49 : vector<64x128xf32>
      %51 = arith.truncf %50 : vector<64x128xf32> to vector<64x128xbf16>
      %c0_19 = arith.constant 0 : index
      %c0_20 = arith.constant 0 : index
      %52 = vector.load %arg5[%c0_19, %c0_20] : memref<64x128xbf16, #tpu.memory_space<vmem>>, vector<64x128xbf16>
      tpu.vector_store %arg5[%c0_19, %c0_20], %51 {strides = array<i32>} : memref<64x128xbf16, #tpu.memory_space<vmem>>, vector<64x128xbf16>,
    } else {
    }
    return
  }
  func.func @transform_0(%arg0: i32, %arg1: i32) -> (i32, i32) {
    %c0_i32 = arith.constant 0 : i32
    return %arg0, %arg1 : i32, i32
  }
  func.func @transform_1(%arg0: i32, %arg1: i32) -> (i32, i32) {
    %c0_i32 = arith.constant 0 : i32
    %c0_i32_0 = arith.constant 0 : i32
    %c0_i32_1 = arith.constant 0 : i32
    return %c0_i32, %c0_i32_0 : i32, i32
  }
  func.func @transform_2(%arg0: i32, %arg1: i32) -> (i32, i32) {
    %c0_i32 = arith.constant 0 : i32
    %c0_i32_0 = arith.constant 0 : i32
    %c0_i32_1 = arith.constant 0 : i32
    return %c0_i32, %c0_i32_0 : i32, i32
  }
  func.func @transform_3(%arg0: i32, %arg1: i32) -> (i32, i32) {
    %c0_i32 = arith.constant 0 : i32
    %c0_i32_0 = arith.constant 0 : i32
    return %arg0, %c0_i32 : i32, i32
  }
}

module attributes {stable_mosaic.version = 11 : i64} {
  func.func @_agg_ln_relu_kernel(%arg0: i32, %arg1: i32, %arg2: memref<64x128xbf16, #tpu.memory_space<vmem>>, %arg3: memref<128x128xbf16, #tpu.memory_space<vmem>>, %arg4: memref<8x128xf32, #tpu.memory_space<vmem>>, %arg5: memref<64x128xf32, #tpu.memory_space<vmem>>, %arg6: memref<64x128xf32, #tpu.memory_space<vmem>>) attributes {dimension_semantics = [#tpu.dimension_semantics<parallel>, #tpu.dimension_semantics<arbitrary>], iteration_bounds = array<i64: 2, 1>, scalar_prefetch = 0 : i64, scratch_operands = 1 : i64, tpu.core_type = #tpu.core_type<tc>, window_params = [{transform_indices = @transform_0, window_bounds = array<i64: 64, 128>}, {pipeline_mode = #tpu.pipeline_mode<synchronous>, transform_indices = @transform_1, window_bounds = array<i64: 128, 128>}, {pipeline_mode = #tpu.pipeline_mode<synchronous>, transform_indices = @transform_2, window_bounds = array<i64: 8, 128>}, {transform_indices = @transform_3, window_bounds = array<i64: 64, 128>}]} {
    %c0_i32 = arith.constant 0 : i32
    %0 = arith.cmpi eq, %arg1, %c0_i32 : i32
    %1 = arith.extui %0 : i1 to i32
    %c0_i32_0 = arith.constant 0 : i32
    %2 = arith.cmpi ne, %1, %c0_i32_0 : i32
    scf.if %2 {
      %cst_9 = arith.constant 0.000000e+00 : f32
      %15 = vector.broadcast %cst_9 : f32 to vector<64x128xf32>
      %c0_10 = arith.constant 0 : index
      %c0_11 = arith.constant 0 : index
      %16 = vector.load %arg6[%c0_10, %c0_11] : memref<64x128xf32, #tpu.memory_space<vmem>>, vector<64x128xf32>
      tpu.vector_store %arg6[%c0_10, %c0_11], %15 {strides = array<i32>} : memref<64x128xf32, #tpu.memory_space<vmem>>, vector<64x128xf32>,
    } else {
    }
    %c128_i32 = arith.constant 128 : i32
    %3 = arith.muli %arg1, %c128_i32 : i32
    %4 = tpu.assume_multiple %3, 128 : i32
    %5 = arith.index_cast %4 : i32 to index
    %c0 = arith.constant 0 : index
    %6 = vector.load %arg3[%5, %c0] : memref<128x128xbf16, #tpu.memory_space<vmem>>, vector<128x128xbf16>
    %c0_1 = arith.constant 0 : index
    %c0_2 = arith.constant 0 : index
    %7 = vector.load %arg6[%c0_1, %c0_2] : memref<64x128xf32, #tpu.memory_space<vmem>>, vector<64x128xf32>
    %c0_3 = arith.constant 0 : index
    %c0_4 = arith.constant 0 : index
    %8 = vector.load %arg2[%c0_3, %c0_4] : memref<64x128xbf16, #tpu.memory_space<vmem>>, vector<64x128xbf16>
    %cst = arith.constant dense<0.000000e+00> : vector<64x128xf32>
    %9 = tpu.matmul %8, %6, %cst {dimension_numbers = #tpu.dot_dimension_numbers<[1], [0], [0], [1], [0, 0, 1, 1], [], []>} : vector<64x128xbf16>, vector<128x128xbf16>, vector<64x128xf32> -> vector<64x128xf32>
    %10 = arith.addf %7, %9 : vector<64x128xf32>
    %c0_5 = arith.constant 0 : index
    %c0_6 = arith.constant 0 : index
    %11 = vector.load %arg6[%c0_5, %c0_6] : memref<64x128xf32, #tpu.memory_space<vmem>>, vector<64x128xf32>
    tpu.vector_store %arg6[%c0_5, %c0_6], %10 {strides = array<i32>} : memref<64x128xf32, #tpu.memory_space<vmem>>, vector<64x128xf32>,
    %c0_i32_7 = arith.constant 0 : i32
    %12 = arith.cmpi eq, %arg1, %c0_i32_7 : i32
    %13 = arith.extui %12 : i1 to i32
    %c0_i32_8 = arith.constant 0 : i32
    %14 = arith.cmpi ne, %13, %c0_i32_8 : i32
    scf.if %14 {
      %c0_9 = arith.constant 0 : index
      %c0_10 = arith.constant 0 : index
      %15 = vector.load %arg4[%c0_9, %c0_10] : memref<8x128xf32, #tpu.memory_space<vmem>>, vector<8x128xf32>
      %16 = vector.extract_strided_slice %15 {offsets = [0, 0], sizes = [1, 128], strides = [1, 1]} : vector<8x128xf32> to vector<1x128xf32>
      %17 = vector.extract_strided_slice %15 {offsets = [1, 0], sizes = [1, 128], strides = [1, 1]} : vector<8x128xf32> to vector<1x128xf32>
      %18 = vector.extract_strided_slice %15 {offsets = [2, 0], sizes = [1, 128], strides = [1, 1]} : vector<8x128xf32> to vector<1x128xf32>
      %c0_11 = arith.constant 0 : index
      %c0_12 = arith.constant 0 : index
      %19 = vector.load %arg6[%c0_11, %c0_12] : memref<64x128xf32, #tpu.memory_space<vmem>>, vector<64x128xf32>
      %20 = vector.broadcast %16 : vector<1x128xf32> to vector<64x128xf32>
      %21 = arith.addf %19, %20 : vector<64x128xf32>
      %cst_13 = arith.constant dense<0.000000e+00> : vector<64xf32>
      %22 = vector.multi_reduction <add>, %21, %cst_13 [1] : vector<64x128xf32> to vector<64xf32>
      %23 = vector.shape_cast %22 : vector<64xf32> to vector<64x1xf32>
      %cst_14 = arith.constant 1.250000e-01 : f32
      %24 = vector.broadcast %cst_14 : f32 to vector<64x1xf32>
      %25 = arith.mulf %23, %24 : vector<64x1xf32>
      %26 = tpu.iota {dimensions = array<i32: 1>} : vector<1x128xi32>
      %c8_i32 = arith.constant 8 : i32
      %27 = vector.broadcast %c8_i32 : i32 to vector<1x128xi32>
      %28 = arith.cmpi slt, %26, %27 : vector<1x128xi32>
      %29 = arith.extui %28 : vector<1x128xi1> to vector<1x128xi32>
      %30 = arith.sitofp %29 : vector<1x128xi32> to vector<1x128xf32>
      %31 = vector.broadcast %25 : vector<64x1xf32> to vector<64x128xf32>
      %32 = arith.subf %21, %31 : vector<64x128xf32>
      %33 = vector.broadcast %30 : vector<1x128xf32> to vector<64x128xf32>
      %34 = arith.mulf %32, %33 : vector<64x128xf32>
      %35 = arith.mulf %34, %34 : vector<64x128xf32>
      %cst_15 = arith.constant dense<0.000000e+00> : vector<64xf32>
      %36 = vector.multi_reduction <add>, %35, %cst_15 [1] : vector<64x128xf32> to vector<64xf32>
      %37 = vector.shape_cast %36 : vector<64xf32> to vector<64x1xf32>
      %cst_16 = arith.constant 1.250000e-01 : f32
      %38 = vector.broadcast %cst_16 : f32 to vector<64x1xf32>
      %39 = arith.mulf %37, %38 : vector<64x1xf32>
      %cst_17 = arith.constant 9.99999974E-6 : f32
      %40 = vector.broadcast %cst_17 : f32 to vector<64x1xf32>
      %41 = arith.addf %39, %40 : vector<64x1xf32>
      %42 = math.rsqrt %41 : vector<64x1xf32>
      %43 = vector.broadcast %42 : vector<64x1xf32> to vector<64x128xf32>
      %44 = arith.mulf %34, %43 : vector<64x128xf32>
      %45 = vector.broadcast %17 : vector<1x128xf32> to vector<64x128xf32>
      %46 = arith.mulf %44, %45 : vector<64x128xf32>
      %47 = vector.broadcast %18 : vector<1x128xf32> to vector<64x128xf32>
      %48 = arith.addf %46, %47 : vector<64x128xf32>
      %cst_18 = arith.constant 0.000000e+00 : f32
      %49 = vector.broadcast %cst_18 : f32 to vector<64x128xf32>
      %50 = arith.maximumf %48, %49 : vector<64x128xf32>
      %c0_19 = arith.constant 0 : index
      %c0_20 = arith.constant 0 : index
      %51 = vector.load %arg5[%c0_19, %c0_20] : memref<64x128xf32, #tpu.memory_space<vmem>>, vector<64x128xf32>
      tpu.vector_store %arg5[%c0_19, %c0_20], %50 {strides = array<i32>} : memref<64x128xf32, #tpu.memory_space<vmem>>, vector<64x128xf32>,
    } else {
    }
    return
  }
  func.func @transform_0(%arg0: i32, %arg1: i32) -> (i32, i32) {
    %c0_i32 = arith.constant 0 : i32
    return %arg0, %arg1 : i32, i32
  }
  func.func @transform_1(%arg0: i32, %arg1: i32) -> (i32, i32) {
    %c0_i32 = arith.constant 0 : i32
    %c0_i32_0 = arith.constant 0 : i32
    %c0_i32_1 = arith.constant 0 : i32
    return %c0_i32, %c0_i32_0 : i32, i32
  }
  func.func @transform_2(%arg0: i32, %arg1: i32) -> (i32, i32) {
    %c0_i32 = arith.constant 0 : i32
    %c0_i32_0 = arith.constant 0 : i32
    %c0_i32_1 = arith.constant 0 : i32
    return %c0_i32, %c0_i32_0 : i32, i32
  }
  func.func @transform_3(%arg0: i32, %arg1: i32) -> (i32, i32) {
    %c0_i32 = arith.constant 0 : i32
    %c0_i32_0 = arith.constant 0 : i32
    return %arg0, %c0_i32 : i32, i32
  }
}

</mosaic_0001>

<llo_original>
// kernel: encoder_forward.4
$region0: #{encoder_forward.4}
  #allocation0 [shape = 'u32[]', space=smem, size = 0x4, offset = 0x4, fixed_abs, tag = 'smem constant byte address 0x4 - core index']
  #allocation1 [shape = 'u32[144,128]{1,0:T(1,128)}', space=vmem, size = 0x12000, scoped, tag = 'internal scratch']
  %s0 = inlined_call_operand.vmem [shape: bf16[128,128], index: 0, kind: input, shape index: {}]
  %s1 = inlined_call_operand.vmem [shape: bf16[128,128], index: 1, kind: input, shape index: {}]
  %s2 = inlined_call_operand.vmem [shape: bf16[128,128], index: 2, kind: output, shape index: {}]
  %s3 = sld [smem:[#allocation0]]
  $region41: #{encoder_forward.4} parent=0
    _
  %s5 = ssub.s32 1, %s3
  %s6 = scalar_select 0, %s5, %s3
  loop: start=0, step=1, limit=4
  $region2: #{encoder_forward.4} parent=0 // loop_pre_header
    _
  $region3: #{encoder_forward.4} parent=0 // loop_header
    %s8 = sphi 0, %s12
    %p9 = scmp.ge.s32.totalorder %s8, 4
    %s18 = sphi 0, %s20
    %s21 = sphi 0, %s18
    %s22 = sphi 0, %s21
    %s38 = sphi 0, %s22
    %s42 = sphi 0, %s42
    %s44 = sphi 0, %s42
    %s45 = sphi 0, %s44
    %s59 = sphi 0, %s45
    %s65 = sphi 0, %s67
    %s68 = sphi 0, %s65
    %s69 = sphi 0, %s68
    %s85 = sphi 0, %s69
  $region4: #{encoder_forward.4} parent=0 // loop_header_branch
    %11 = sbr.rel (%p9) target = $region8
  $region5: #{encoder_forward.4} parent=0 // loop_body
    %s13 = ssub.s32 %s8, 1
    %s14 = ssub.s32 %s8, 2
    %s15 = sadd.s32 %s8, 1
    %s16 = ssub.s32 %s8, %s15
    %p17 = scmp.eq.s32.totalorder %s16, 0
    %s19 = sadd.s32 %s18, 1
    %s20 = scalar_select %p17, %s18, %s19
    %p23 = pneg %p17
    %p24 = scmp.eq.s32.totalorder %s8, 1
    %p25 = por %p23, %p24
    %p26 = scmp.ne.s32.totalorder %s18, %s21
    %p27 = scmp.eq.s32.totalorder %s8, 0
    %p28 = por %p26, %p27
    %p29 = scmp.ne.s32.totalorder %s18, %s21
    %p30 = scmp.eq.s32.totalorder %s13, 1
    %p31 = por %p29, %p30
    %p32 = scmp.ne.s32.totalorder %s21, %s22
    %p33 = scmp.eq.s32.totalorder %s13, 0
    %p34 = por %p32, %p33
    %p35 = scmp.ne.s32.totalorder %s21, %s22
    %p36 = scmp.eq.s32.totalorder %s14, 1
    %p37 = por %p35, %p36
    %p39 = scmp.ne.s32.totalorder %s22, %s38
    %p40 = scmp.eq.s32.totalorder %s14, 0
    %p41 = por %p39, %p40
    %s43 = sadd.s32 %s42, 1
    %p46 = scmp.eq.s32.totalorder %s8, 1
    %p47 = scmp.ne.s32.totalorder %s42, %s44
    %p48 = scmp.eq.s32.totalorder %s8, 0
    %p49 = por %p47, %p48
    %p50 = scmp.ne.s32.totalorder %s42, %s44
    %p51 = scmp.eq.s32.totalorder %s13, 1
    %p52 = por %p50, %p51
    %p53 = scmp.ne.s32.totalorder %s44, %s45
    %p54 = scmp.eq.s32.totalorder %s13, 0
    %p55 = por %p53, %p54
    %p56 = scmp.ne.s32.totalorder %s44, %s45
    %p57 = scmp.eq.s32.totalorder %s14, 1
    %p58 = por %p56, %p57
    %p60 = scmp.ne.s32.totalorder %s45, %s59
    %p61 = scmp.eq.s32.totalorder %s14, 0
    %p62 = por %p60, %p61
    %s63 = ssub.s32 %s8, %s15
    %p64 = scmp.eq.s32.totalorder %s63, 0
    %s66 = sadd.s32 %s65, 1
    %s67 = scalar_select %p64, %s65, %s66
    %p70 = pneg %p64
    %p71 = scmp.eq.s32.totalorder %s8, 1
    %p72 = por %p70, %p71
    %p73 = scmp.ne.s32.totalorder %s65, %s68
    %p74 = scmp.eq.s32.totalorder %s8, 0
    %p75 = por %p73, %p74
    %p76 = scmp.ne.s32.totalorder %s65, %s68
    %p77 = scmp.eq.s32.totalorder %s13, 1
    %p78 = por %p76, %p77
    %p79 = scmp.ne.s32.totalorder %s68, %s69
    %p80 = scmp.eq.s32.totalorder %s13, 0
    %p81 = por %p79, %p80
    %p82 = scmp.ne.s32.totalorder %s68, %s69
    %p83 = scmp.eq.s32.totalorder %s14, 1
    %p84 = por %p82, %p83
    %p86 = scmp.ne.s32.totalorder %s69, %s85
    %p87 = scmp.eq.s32.totalorder %s14, 0
    %p88 = por %p86, %p87
    %p89 = scmp.le.s32.totalorder 1, %s8
    %p90 = scmp.lt.s32.totalorder %s8, 3
    %p91 = pnand %p89, %p90
    %p92 = pneg %p91
    // Predicated region
    $region9: #{encoder_forward.4} parent=5 // pred_check
      _
    $region10: #{encoder_forward.4} parent=5 // pred_check_branch
      %94 = sbr.rel (%p91) target = $region12
    $region11: #{encoder_forward.4} parent=5 // pred_region
      %s95 = ssub.s32 %s8, 1
      // Predicated region
      $region13: #{encoder_forward.4} parent=11 // pred_check
        %p96 = pneg %p55
      $region14: #{encoder_forward.4} parent=11 // pred_check_branch
        %98 = sbr.rel (%p96) target = $region16
      $region15: #{encoder_forward.4} parent=11 // pred_region
        _
      $region16: #{encoder_forward.4} parent=11 // pred_fallthru
        _
    $region12: #{encoder_forward.4} parent=5 // pred_fallthru
      _
    %p99 = scmp.lt.s32.totalorder %s8, 2
    // Predicated region
    $region17: #{encoder_forward.4} parent=5 // pred_check
      %p100 = pneg %p99
    $region18: #{encoder_forward.4} parent=5 // pred_check_branch
      %102 = sbr.rel (%p100) target = $region20
    $region19: #{encoder_forward.4} parent=5 // pred_region
      // Predicated region
      $region21: #{encoder_forward.4} parent=19 // pred_check
        %p103 = pneg %p28
      $region22: #{encoder_forward.4} parent=19 // pred_check_branch
        %105 = sbr.rel (%p103) target = $region24
      $region23: #{encoder_forward.4} parent=19 // pred_region
        %s106 = smul.u32 8, %s8
        %p107 = scmp.lt.s32.totalorder %s106, 15
        %s108 = scalar_select %p107, %s106, 15
        %s109 = smul.addr %s108, 4
        %s110 = scalar_lea.vmem %s0, %s109
        %s111 = smul.u32 8, %s8
      $region24: #{encoder_forward.4} parent=19 // pred_fallthru
        _
    $region20: #{encoder_forward.4} parent=5 // pred_fallthru
      _
    %p112 = scmp.le.s32.totalorder 1, %s8
    %p113 = scmp.lt.s32.totalorder %s8, 3
    %p114 = pnand %p112, %p113
    %p115 = pneg %p114
    // Predicated region
    $region25: #{encoder_forward.4} parent=5 // pred_check
      _
    $region26: #{encoder_forward.4} parent=5 // pred_check_branch
      %117 = sbr.rel (%p114) target = $region28
    $region27: #{encoder_forward.4} parent=5 // pred_region
      %s118 = ssub.s32 %s8, 1
      %s119 = smul.u32 8, %s13
      %p120 = scmp.lt.s32.totalorder %s119, 15
      %s121 = scalar_select %p120, %s119, 15
      %s122 = smul.addr %s121, 4
      %s123 = scalar_lea.vmem %s0, %s122
      %p124 = pneg %p34
      %p125 = pneg %p31
      %p126 = pneg %p55
      %p127 = pneg %p52
      %p128 = pneg %p81
      %p129 = pneg %p78
      %s130 = smul.u32 8, %s13
      %p131 = scmp.lt.s32.totalorder %s130, 15
      %s132 = scalar_select %p131, %s130, 15
      %s133 = smul.addr %s132, 4
      %s134 = scalar_lea.vmem %s2, %s133
      %s135 = smul.u32 8, %s13
      %p136 = scmp.lt.s32.totalorder %s135, 15
      %s137 = scalar_select %p136, %s135, 15
      %s138 = smul.addr %s137, 4
      %s139 = scalar_lea.vmem %s0, %s138
      %s140 = smul.u32 8, %s13
      %s141 = smul.u32 8, %s13
      %p142 = scmp.lt.s32.totalorder %s141, 15
      %s143 = scalar_select %p142, %s141, 15
      %s144 = smul.addr %s143, 4
      %s145 = scalar_lea.vmem %s2, %s144
      %s146 = smul.u32 8, %s13
      %v148 = vld [vmem:[%s139] sm:$0xf]
      %v149 = vld [vmem:[%s139 + $0x4] sm:$0xf]
      %v150 = vld [vmem:[%s139 + $0x8] sm:$0xf]
      %v151 = vld [vmem:[%s139 + $0xc] sm:$0xf]
      %v152 = vld [vmem:[%s139 + $0x10] sm:$0xf]
      %v153 = vld [vmem:[%s139 + $0x14] sm:$0xf]
      %v154 = vld [vmem:[%s139 + $0x18] sm:$0xf]
      %v155 = vld [vmem:[%s139 + $0x1c] sm:$0xf]
      %v156 = vld [vmem:[%s1] sm:$0xf]
      %v157 = vld [vmem:[%s1 + $0x4] sm:$0xf]
      %v158 = vld [vmem:[%s1 + $0x8] sm:$0xf]
      %v159 = vld [vmem:[%s1 + $0xc] sm:$0xf]
      %v160 = vld [vmem:[%s1 + $0x10] sm:$0xf]
      %v161 = vld [vmem:[%s1 + $0x14] sm:$0xf]
      %v162 = vld [vmem:[%s1 + $0x18] sm:$0xf]
      %v163 = vld [vmem:[%s1 + $0x1c] sm:$0xf]
      %v164 = vld [vmem:[%s1 + $0x20] sm:$0xf]
      %v165 = vld [vmem:[%s1 + $0x24] sm:$0xf]
      %v166 = vld [vmem:[%s1 + $0x28] sm:$0xf]
      %v167 = vld [vmem:[%s1 + $0x2c] sm:$0xf]
      %v168 = vld [vmem:[%s1 + $0x30] sm:$0xf]
      %v169 = vld [vmem:[%s1 + $0x34] sm:$0xf]
      %v170 = vld [vmem:[%s1 + $0x38] sm:$0xf]
      %v171 = vld [vmem:[%s1 + $0x3c] sm:$0xf]
      %v180 = vunpack.c.l.b16 %v148
      %v181 = vunpack.c.l.b16 %v149
      %v182 = vunpack.c.l.b16 %v150
      %v183 = vunpack.c.l.b16 %v151
      %v184 = vunpack.c.l.b16 %v152
      %v185 = vunpack.c.l.b16 %v153
      %v186 = vunpack.c.l.b16 %v154
      %v187 = vunpack.c.l.b16 %v155
      %v188 = vpack.c.b16 %v181, %v180
      %v189 = vpack.c.b16 %v183, %v182
      %v190 = vpack.c.b16 %v185, %v184
      %v191 = vpack.c.b16 %v187, %v186
      %v212 = vunpack.c.l.b16 %v156
      %v213 = vunpack.c.l.b16 %v157
      %v214 = vunpack.c.l.b16 %v158
      %v215 = vunpack.c.l.b16 %v159
      %v216 = vunpack.c.l.b16 %v160
      %v217 = vunpack.c.l.b16 %v161
      %v218 = vunpack.c.l.b16 %v162
      %v219 = vunpack.c.l.b16 %v163
      %v220 = vunpack.c.l.b16 %v164
      %v221 = vunpack.c.l.b16 %v165
      %v222 = vunpack.c.l.b16 %v166
      %v223 = vunpack.c.l.b16 %v167
      %v224 = vunpack.c.l.b16 %v168
      %v225 = vunpack.c.l.b16 %v169
      %v226 = vunpack.c.l.b16 %v170
      %v227 = vunpack.c.l.b16 %v171
      %v228 = vpack.c.b16 %v213, %v212
      %v229 = vpack.c.b16 %v215, %v214
      %v230 = vpack.c.b16 %v217, %v216
      %v231 = vpack.c.b16 %v219, %v218
      %v232 = vpack.c.b16 %v221, %v220
      %v233 = vpack.c.b16 %v223, %v222
      %v234 = vpack.c.b16 %v225, %v224
      %v235 = vpack.c.b16 %v227, %v226
      %244 = vmatprep.subr.bf16.mxu0 0
      %245 = vmatpush1.bf16.msra.mxu0 %v228
      %246 = vmatprep.subr.bf16.mxu0 0
      %247 = vmatpush1.bf16.msra.mxu0 %v229
      %248 = vmatprep.subr.bf16.mxu0 0
      %249 = vmatpush1.bf16.msra.mxu0 %v230
      %250 = vmatprep.subr.bf16.mxu0 0
      %251 = vmatpush1.bf16.msra.mxu0 %v231
      %252 = vmatprep.subr.bf16.mxu0 0
      %253 = vmatpush1.bf16.msra.mxu0 %v232
      %254 = vmatprep.subr.bf16.mxu0 0
      %255 = vmatpush1.bf16.msra.mxu0 %v233
      %256 = vmatprep.subr.bf16.mxu0 0
      %257 = vmatpush1.bf16.msra.mxu0 %v234
      %258 = vmatprep.subr.bf16.mxu0 0
      %259 = vmatpush1.bf16.msra.mxu0 %v235
      %260 = vmatprep.subr.bf16.mxu0 0
      %261 = vmatpush1.bf16.msra.mxu0 0
      %262 = vmatprep.subr.bf16.mxu0 0
      %263 = vmatpush1.bf16.msra.mxu0 0
      %264 = vmatprep.subr.bf16.mxu0 0
      %265 = vmatpush1.bf16.msra.mxu0 0
      %266 = vmatprep.subr.bf16.mxu0 0
      %267 = vmatpush1.bf16.msra.mxu0 0
      %268 = vmatprep.subr.bf16.mxu0 0
      %269 = vmatpush1.bf16.msra.mxu0 0
      %270 = vmatprep.subr.bf16.mxu0 0
      %271 = vmatpush1.bf16.msra.mxu0 0
      %272 = vmatprep.subr.bf16.mxu0 0
      %273 = vmatpush1.bf16.msra.mxu0 0
      %274 = vmatprep.subr.bf16.mxu0 0
      %275 = vmatpush1.bf16.msra.mxu0 0
      %276 = vmatprep.mubr.bf16.mxu0 0
      %277 = vmatmul.mubr.bf16.gmra.mrb[0].mxu0 %v188
      %v278 = vpop.f32.mrb[0].mxu0
      %v279 = vadd.f32 0.0, %v278
      %v280 = vpop.f32.mrb[0].mxu0
      %v281 = vpop.f32.mrb[0].mxu0
      %v282 = vadd.f32 0.0, %v281
      %v283 = vpop.f32.mrb[0].mxu0
      %284 = vmatprep.mubr.bf16.mxu0 0
      %285 = vmatmul.mubr.bf16.gmra.mrb[0].mxu0 %v189
      %v286 = vpop.f32.mrb[0].mxu0
      %v287 = vadd.f32 0.0, %v286
      %v288 = vpop.f32.mrb[0].mxu0
      %v289 = vpop.f32.mrb[0].mxu0
      %v290 = vadd.f32 0.0, %v289
      %v291 = vpop.f32.mrb[0].mxu0
      %292 = vmatprep.mubr.bf16.mxu0 0
      %293 = vmatmul.mubr.bf16.gmra.mrb[0].mxu0 %v190
      %v294 = vpop.f32.mrb[0].mxu0
      %v295 = vadd.f32 0.0, %v294
      %v296 = vpop.f32.mrb[0].mxu0
      %v297 = vpop.f32.mrb[0].mxu0
      %v298 = vadd.f32 0.0, %v297
      %v299 = vpop.f32.mrb[0].mxu0
      %300 = vmatprep.mubr.bf16.mxu0 0
      %301 = vmatmul.mubr.bf16.gmra.mrb[0].mxu0 %v191
      %v302 = vpop.f32.mrb[0].mxu0
      %v303 = vadd.f32 0.0, %v302
      %v304 = vpop.f32.mrb[0].mxu0
      %v305 = vpop.f32.mrb[0].mxu0
      %v306 = vadd.f32 0.0, %v305
      %v307 = vpop.f32.mrb[0].mxu0
      %308 = vdwg.mxu0
      %v309 = vpack.c.bf16 %v282, %v279
      %v310 = vpack.c.bf16 %v290, %v287
      %v311 = vpack.c.bf16 %v298, %v295
      %v312 = vpack.c.bf16 %v306, %v303
      %v317 = vunpack.c.l.b16 %v309
      %v318 = vunpack.c.h.b16 %v309
      %v319 = vunpack.c.l.b16 %v310
      %v320 = vunpack.c.h.b16 %v310
      %v321 = vunpack.c.l.b16 %v311
      %v322 = vunpack.c.h.b16 %v311
      %v323 = vunpack.c.l.b16 %v312
      %v324 = vunpack.c.h.b16 %v312
      %v325 = vpack.c.b16 %v317, %v317
      %v326 = vpack.c.b16 %v318, %v318
      %v327 = vpack.c.b16 %v319, %v319
      %v328 = vpack.c.b16 %v320, %v320
      %v329 = vpack.c.b16 %v321, %v321
      %v330 = vpack.c.b16 %v322, %v322
      %v331 = vpack.c.b16 %v323, %v323
      %v332 = vpack.c.b16 %v324, %v324
      %341 = vst [vmem:[%s145] sm:$0xf] %v325
      %342 = vst [vmem:[%s145 + $0x4] sm:$0xf] %v326
      %343 = vst [vmem:[%s145 + $0x8] sm:$0xf] %v327
      %344 = vst [vmem:[%s145 + $0xc] sm:$0xf] %v328
      %345 = vst [vmem:[%s145 + $0x10] sm:$0xf] %v329
      %346 = vst [vmem:[%s145 + $0x14] sm:$0xf] %v330
      %347 = vst [vmem:[%s145 + $0x18] sm:$0xf] %v331
      %348 = vst [vmem:[%s145 + $0x1c] sm:$0xf] %v332
      %s349 = smul.u32 8, %s13
      %p350 = scmp.lt.s32.totalorder %s349, 15
      %s351 = scalar_select %p350, %s349, 15
      %s352 = smul.addr %s351, 4
      %s353 = scalar_lea.vmem %s2, %s352
      // Predicated region
      $region29: #{encoder_forward.4} parent=27 // pred_check
        %p354 = pneg %p78
      $region30: #{encoder_forward.4} parent=27 // pred_check_branch
        %356 = sbr.rel (%p354) target = $region32
      $region31: #{encoder_forward.4} parent=27 // pred_region
        %s357 = smul.u32 8, %s13
      $region32: #{encoder_forward.4} parent=27 // pred_fallthru
        _
    $region28: #{encoder_forward.4} parent=5 // pred_fallthru
      _
    %p358 = scmp.le.s32.totalorder 2, %s8
    // Predicated region
    $region33: #{encoder_forward.4} parent=5 // pred_check
      %p359 = pneg %p358
    $region34: #{encoder_forward.4} parent=5 // pred_check_branch
      %361 = sbr.rel (%p359) target = $region36
    $region35: #{encoder_forward.4} parent=5 // pred_region
      %s362 = ssub.s32 %s8, 2
      // Predicated region
      $region37: #{encoder_forward.4} parent=35 // pred_check
        %p363 = pneg %p84
      $region38: #{encoder_forward.4} parent=35 // pred_check_branch
        %365 = sbr.rel (%p363) target = $region40
      $region39: #{encoder_forward.4} parent=35 // pred_region
        %s366 = smul.u32 8, %s14
        %p367 = scmp.lt.s32.totalorder %s366, 15
        %s368 = scalar_select %p367, %s366, 15
        %s369 = smul.addr %s368, 4
        %s370 = scalar_lea.vmem %s2, %s369
      $region40: #{encoder_forward.4} parent=35 // pred_fallthru
        _
    $region36: #{encoder_forward.4} parent=5 // pred_fallthru
      _
  $region6: #{encoder_forward.4} parent=0 // loop_footer
    %s12 = sadd.s32 1, %s8
  $region7: #{encoder_forward.4} parent=0 // loop_footer_branch
    %7 = sbr.rel target = $region3
  $region8: #{encoder_forward.4} parent=0 // loop_exit
    _

// kernel: encoder_forward.7
$region0: #{encoder_forward.7}
  #allocation0 [shape = 'u32[]', space=smem, size = 0x4, offset = 0x4, fixed_abs, tag = 'smem constant byte address 0x4 - core index']
  #allocation1 [shape = 'u32[144,128]{1,0:T(1,128)}', space=vmem, size = 0x12000, scoped, tag = 'internal scratch']
  #allocation2 [shape = 'f32[64,128]{1,0:T(8,128)}', space=vmem, size = 0x8000, scoped, tag = 'scratch operand']
  %s0 = inlined_call_operand.vmem [shape: bf16[128,128], index: 0, kind: input, shape index: {}]
  %s1 = inlined_call_operand.vmem [shape: bf16[128,128], index: 1, kind: input, shape index: {}]
  %s2 = inlined_call_operand.vmem [shape: f32[8,128], index: 2, kind: input, shape index: {}]
  %s3 = inlined_call_operand.vmem [shape: f32[128,128], index: 3, kind: output, shape index: {}]
  %s4 = sld [smem:[#allocation0]]
  $region53: #{encoder_forward.7} parent=0
    _
  %s6 = ssub.s32 1, %s4
  %s7 = scalar_select 0, %s6, %s4
  loop: start=0, step=1, limit=4
  $region2: #{encoder_forward.7} parent=0 // loop_pre_header
    _
  $region3: #{encoder_forward.7} parent=0 // loop_header
    %s9 = sphi 0, %s13
    %p10 = scmp.ge.s32.totalorder %s9, 4
    %s16 = sphi 0, %s28
    %s17 = sphi 0, %s24
    %s18 = sphi 0, %s16
    %s19 = sphi 0, %s17
    %s20 = sphi 0, %s18
    %s21 = sphi 0, %s19
    %s33 = sphi 0, %s35
    %s36 = sphi 0, %s33
    %s37 = sphi 0, %s36
    %s53 = sphi 0, %s37
    %s57 = sphi 0, %s57
    %s59 = sphi 0, %s57
    %s60 = sphi 0, %s59
    %s74 = sphi 0, %s60
    %s78 = sphi 0, %s78
    %s80 = sphi 0, %s78
    %s81 = sphi 0, %s80
    %s95 = sphi 0, %s81
    %s101 = sphi 0, %s103
    %s104 = sphi 0, %s101
    %s105 = sphi 0, %s104
    %s121 = sphi 0, %s105
  $region4: #{encoder_forward.7} parent=0 // loop_header_branch
    %12 = sbr.rel (%p10) target = $region8
  $region5: #{encoder_forward.7} parent=0 // loop_body
    %s14 = ssub.s32 %s9, 1
    %s15 = ssub.s32 %s9, 2
    %s22 = sadd.s32 1, %s17
    %p23 = scmp.ge.s32.totalorder %s22, 1
    %s24 = scalar_select %p23, 0, %s22
    %s25 = sadd.s32 1, %s16
    %s26 = scalar_select %p23, %s25, %s16
    %p27 = scmp.ge.s32.totalorder %s26, 2
    %s28 = scalar_select %p27, 0, %s26
    %s29 = ssub.s32 %s16, %s28
    %s30 = ssub.s32 %s17, %s24
    %s31 = sor.u32 %s29, %s30
    %p32 = scmp.eq.s32.totalorder %s31, 0
    %s34 = sadd.s32 %s33, 1
    %s35 = scalar_select %p32, %s33, %s34
    %p38 = pneg %p32
    %p39 = scmp.eq.s32.totalorder %s9, 1
    %p40 = por %p38, %p39
    %p41 = scmp.ne.s32.totalorder %s33, %s36
    %p42 = scmp.eq.s32.totalorder %s9, 0
    %p43 = por %p41, %p42
    %p44 = scmp.ne.s32.totalorder %s33, %s36
    %p45 = scmp.eq.s32.totalorder %s14, 1
    %p46 = por %p44, %p45
    %p47 = scmp.ne.s32.totalorder %s36, %s37
    %p48 = scmp.eq.s32.totalorder %s14, 0
    %p49 = por %p47, %p48
    %p50 = scmp.ne.s32.totalorder %s36, %s37
    %p51 = scmp.eq.s32.totalorder %s15, 1
    %p52 = por %p50, %p51
    %p54 = scmp.ne.s32.totalorder %s37, %s53
    %p55 = scmp.eq.s32.totalorder %s15, 0
    %p56 = por %p54, %p55
    %s58 = sadd.s32 %s57, 1
    %p61 = scmp.eq.s32.totalorder %s9, 1
    %p62 = scmp.ne.s32.totalorder %s57, %s59
    %p63 = scmp.eq.s32.totalorder %s9, 0
    %p64 = por %p62, %p63
    %p65 = scmp.ne.s32.totalorder %s57, %s59
    %p66 = scmp.eq.s32.totalorder %s14, 1
    %p67 = por %p65, %p66
    %p68 = scmp.ne.s32.totalorder %s59, %s60
    %p69 = scmp.eq.s32.totalorder %s14, 0
    %p70 = por %p68, %p69
    %p71 = scmp.ne.s32.totalorder %s59, %s60
    %p72 = scmp.eq.s32.totalorder %s15, 1
    %p73 = por %p71, %p72
    %p75 = scmp.ne.s32.totalorder %s60, %s74
    %p76 = scmp.eq.s32.totalorder %s15, 0
    %p77 = por %p75, %p76
    %s79 = sadd.s32 %s78, 1
    %p82 = scmp.eq.s32.totalorder %s9, 1
    %p83 = scmp.ne.s32.totalorder %s78, %s80
    %p84 = scmp.eq.s32.totalorder %s9, 0
    %p85 = por %p83, %p84
    %p86 = scmp.ne.s32.totalorder %s78, %s80
    %p87 = scmp.eq.s32.totalorder %s14, 1
    %p88 = por %p86, %p87
    %p89 = scmp.ne.s32.totalorder %s80, %s81
    %p90 = scmp.eq.s32.totalorder %s14, 0
    %p91 = por %p89, %p90
    %p92 = scmp.ne.s32.totalorder %s80, %s81
    %p93 = scmp.eq.s32.totalorder %s15, 1
    %p94 = por %p92, %p93
    %p96 = scmp.ne.s32.totalorder %s81, %s95
    %p97 = scmp.eq.s32.totalorder %s15, 0
    %p98 = por %p96, %p97
    %s99 = ssub.s32 %s16, %s28
    %p100 = scmp.eq.s32.totalorder %s99, 0
    %s102 = sadd.s32 %s101, 1
    %s103 = scalar_select %p100, %s101, %s102
    %p106 = pneg %p100
    %p107 = scmp.eq.s32.totalorder %s9, 1
    %p108 = por %p106, %p107
    %p109 = scmp.ne.s32.totalorder %s101, %s104
    %p110 = scmp.eq.s32.totalorder %s9, 0
    %p111 = por %p109, %p110
    %p112 = scmp.ne.s32.totalorder %s101, %s104
    %p113 = scmp.eq.s32.totalorder %s14, 1
    %p114 = por %p112, %p113
    %p115 = scmp.ne.s32.totalorder %s104, %s105
    %p116 = scmp.eq.s32.totalorder %s14, 0
    %p117 = por %p115, %p116
    %p118 = scmp.ne.s32.totalorder %s104, %s105
    %p119 = scmp.eq.s32.totalorder %s15, 1
    %p120 = por %p118, %p119
    %p122 = scmp.ne.s32.totalorder %s105, %s121
    %p123 = scmp.eq.s32.totalorder %s15, 0
    %p124 = por %p122, %p123
    %p125 = scmp.le.s32.totalorder 1, %s9
    %p126 = scmp.lt.s32.totalorder %s9, 3
    %p127 = pnand %p125, %p126
    %p128 = pneg %p127
    // Predicated region
    $region9: #{encoder_forward.7} parent=5 // pred_check
      _
    $region10: #{encoder_forward.7} parent=5 // pred_check_branch
      %130 = sbr.rel (%p127) target = $region12
    $region11: #{encoder_forward.7} parent=5 // pred_region
      %s131 = ssub.s32 %s9, 1
      // Predicated region
      $region13: #{encoder_forward.7} parent=11 // pred_check
        %p132 = pneg %p70
      $region14: #{encoder_forward.7} parent=11 // pred_check_branch
        %134 = sbr.rel (%p132) target = $region16
      $region15: #{encoder_forward.7} parent=11 // pred_region
        _
      $region16: #{encoder_forward.7} parent=11 // pred_fallthru
        _
      // Predicated region
      $region17: #{encoder_forward.7} parent=11 // pred_check
        %p135 = pneg %p91
      $region18: #{encoder_forward.7} parent=11 // pred_check_branch
        %137 = sbr.rel (%p135) target = $region20
      $region19: #{encoder_forward.7} parent=11 // pred_region
        _
      $region20: #{encoder_forward.7} parent=11 // pred_fallthru
        _
    $region12: #{encoder_forward.7} parent=5 // pred_fallthru
      _
    %p138 = scmp.lt.s32.totalorder %s9, 2
    // Predicated region
    $region21: #{encoder_forward.7} parent=5 // pred_check
      %p139 = pneg %p138
    $region22: #{encoder_forward.7} parent=5 // pred_check_branch
      %141 = sbr.rel (%p139) target = $region24
    $region23: #{encoder_forward.7} parent=5 // pred_region
      // Predicated region
      $region25: #{encoder_forward.7} parent=23 // pred_check
        %p142 = pneg %p43
      $region26: #{encoder_forward.7} parent=23 // pred_check_branch
        %144 = sbr.rel (%p142) target = $region28
      $region27: #{encoder_forward.7} parent=23 // pred_region
        %s145 = smul.u32 8, %s16
        %p146 = scmp.lt.s32.totalorder %s145, 15
        %s147 = scalar_select %p146, %s145, 15
        %p148 = scmp.lt.s32.totalorder %s17, 0
        %s149 = scalar_select %p148, %s17, 0
        %s150 = sadd.s32 %s149, %s147
        %s151 = smul.addr %s150, 4
        %s152 = scalar_lea.vmem %s0, %s151
        %s153 = smul.u32 8, %s16
      $region28: #{encoder_forward.7} parent=23 // pred_fallthru
        _
    $region24: #{encoder_forward.7} parent=5 // pred_fallthru
      _
    %p154 = scmp.le.s32.totalorder 1, %s9
    %p155 = scmp.lt.s32.totalorder %s9, 3
    %p156 = pnand %p154, %p155
    %p157 = pneg %p156
    // Predicated region
    $region29: #{encoder_forward.7} parent=5 // pred_check
      _
    $region30: #{encoder_forward.7} parent=5 // pred_check_branch
      %159 = sbr.rel (%p156) target = $region32
    $region31: #{encoder_forward.7} parent=5 // pred_region
      %s160 = ssub.s32 %s9, 1
      %s161 = smul.u32 8, %s18
      %p162 = scmp.lt.s32.totalorder %s161, 15
      %s163 = scalar_select %p162, %s161, 15
      %p164 = scmp.lt.s32.totalorder %s19, 0
      %s165 = scalar_select %p164, %s19, 0
      %s166 = sadd.s32 %s165, %s163
      %s167 = smul.addr %s166, 4
      %s168 = scalar_lea.vmem %s0, %s167
      %p169 = pneg %p49
      %p170 = pneg %p46
      %p171 = pneg %p70
      %p172 = pneg %p67
      %p173 = pneg %p91
      %p174 = pneg %p88
      %p175 = pneg %p117
      %p176 = pneg %p114
      %s177 = smul.u32 8, %s18
      %p178 = scmp.lt.s32.totalorder %s177, 15
      %s179 = scalar_select %p178, %s177, 15
      %s180 = smul.addr %s179, 8
      %s181 = scalar_lea.vmem %s3, %s180
      %s182 = smul.u32 8, %s18
      %p183 = scmp.lt.s32.totalorder %s182, 15
      %s184 = scalar_select %p183, %s182, 15
      %p185 = scmp.lt.s32.totalorder %s19, 0
      %s186 = scalar_select %p185, %s19, 0
      %s187 = sadd.s32 %s186, %s184
      %s188 = smul.addr %s187, 4
      %s189 = scalar_lea.vmem %s0, %s188
      %s190 = smul.u32 8, %s18
      %s191 = smul.u32 8, %s18
      %p192 = scmp.lt.s32.totalorder %s191, 15
      %s193 = scalar_select %p192, %s191, 15
      %s194 = smul.addr %s193, 8
      %s195 = scalar_lea.vmem %s3, %s194
      %s196 = smul.u32 8, %s18
      %p198 = scmp.eq.s32.totalorder %s19, 0
      // Predicated region
      $region33: #{encoder_forward.7} parent=31 // pred_check
        %p199 = pneg %p198
      $region34: #{encoder_forward.7} parent=31 // pred_check_branch
        %201 = sbr.rel (%p199) target = $region36
      $region35: #{encoder_forward.7} parent=31 // pred_region
        %202 = vst [vmem:[#allocation2] sm:$0xff] 0.0
        %203 = vst [vmem:[#allocation2 + $0x8] sm:$0xff] 0.0
        %204 = vst [vmem:[#allocation2 + $0x10] sm:$0xff] 0.0
        %205 = vst [vmem:[#allocation2 + $0x18] sm:$0xff] 0.0
        %206 = vst [vmem:[#allocation2 + $0x20] sm:$0xff] 0.0
        %207 = vst [vmem:[#allocation2 + $0x28] sm:$0xff] 0.0
        %208 = vst [vmem:[#allocation2 + $0x30] sm:$0xff] 0.0
        %209 = vst [vmem:[#allocation2 + $0x38] sm:$0xff] 0.0
      $region36: #{encoder_forward.7} parent=31 // pred_fallthru
        _
      %s210 = smul.u32 %s19, 128
      %s211 = sshra.s32 %s210, 3
      %s212 = sand.u32 %s210, 7
      %s213 = smul.addr %s211, 4
      %s214 = scalar_lea.vmem %s1, %s213
      %v215 = vld [vmem:[%s214] sm:$0xf]
      %v216 = vld [vmem:[%s214 + $0x4] sm:$0xf]
      %v217 = vld [vmem:[%s214 + $0x8] sm:$0xf]
      %v218 = vld [vmem:[%s214 + $0xc] sm:$0xf]
      %v219 = vld [vmem:[%s214 + $0x10] sm:$0xf]
      %v220 = vld [vmem:[%s214 + $0x14] sm:$0xf]
      %v221 = vld [vmem:[%s214 + $0x18] sm:$0xf]
      %v222 = vld [vmem:[%s214 + $0x1c] sm:$0xf]
      %v223 = vld [vmem:[%s214 + $0x20] sm:$0xf]
      %v224 = vld [vmem:[%s214 + $0x24] sm:$0xf]
      %v225 = vld [vmem:[%s214 + $0x28] sm:$0xf]
      %v226 = vld [vmem:[%s214 + $0x2c] sm:$0xf]
      %v227 = vld [vmem:[%s214 + $0x30] sm:$0xf]
      %v228 = vld [vmem:[%s214 + $0x34] sm:$0xf]
      %v229 = vld [vmem:[%s214 + $0x38] sm:$0xf]
      %v230 = vld [vmem:[%s214 + $0x3c] sm:$0xf]
      %v231 = vld [vmem:[#allocation2] sm:$0xff]
      %v232 = vld [vmem:[#allocation2 + $0x8] sm:$0xff]
      %v233 = vld [vmem:[#allocation2 + $0x10] sm:$0xff]
      %v234 = vld [vmem:[#allocation2 + $0x18] sm:$0xff]
      %v235 = vld [vmem:[#allocation2 + $0x20] sm:$0xff]
      %v236 = vld [vmem:[#allocation2 + $0x28] sm:$0xff]
      %v237 = vld [vmem:[#allocation2 + $0x30] sm:$0xff]
      %v238 = vld [vmem:[#allocation2 + $0x38] sm:$0xff]
      %v239 = vld [vmem:[%s189] sm:$0xf]
      %v240 = vld [vmem:[%s189 + $0x4] sm:$0xf]
      %v241 = vld [vmem:[%s189 + $0x8] sm:$0xf]
      %v242 = vld [vmem:[%s189 + $0xc] sm:$0xf]
      %v243 = vld [vmem:[%s189 + $0x10] sm:$0xf]
      %v244 = vld [vmem:[%s189 + $0x14] sm:$0xf]
      %v245 = vld [vmem:[%s189 + $0x18] sm:$0xf]
      %v246 = vld [vmem:[%s189 + $0x1c] sm:$0xf]
      %v255 = vunpack.c.l.b16 %v239
      %v256 = vunpack.c.l.b16 %v240
      %v257 = vunpack.c.l.b16 %v241
      %v258 = vunpack.c.l.b16 %v242
      %v259 = vunpack.c.l.b16 %v243
      %v260 = vunpack.c.l.b16 %v244
      %v261 = vunpack.c.l.b16 %v245
      %v262 = vunpack.c.l.b16 %v246
      %v263 = vpack.c.b16 %v256, %v255
      %v264 = vpack.c.b16 %v258, %v257
      %v265 = vpack.c.b16 %v260, %v259
      %v266 = vpack.c.b16 %v262, %v261
      %v287 = vunpack.c.l.b16 %v215
      %v288 = vunpack.c.l.b16 %v216
      %v289 = vunpack.c.l.b16 %v217
      %v290 = vunpack.c.l.b16 %v218
      %v291 = vunpack.c.l.b16 %v219
      %v292 = vunpack.c.l.b16 %v220
      %v293 = vunpack.c.l.b16 %v221
      %v294 = vunpack.c.l.b16 %v222
      %v295 = vunpack.c.l.b16 %v223
      %v296 = vunpack.c.l.b16 %v224
      %v297 = vunpack.c.l.b16 %v225
      %v298 = vunpack.c.l.b16 %v226
      %v299 = vunpack.c.l.b16 %v227
      %v300 = vunpack.c.l.b16 %v228
      %v301 = vunpack.c.l.b16 %v229
      %v302 = vunpack.c.l.b16 %v230
      %v303 = vpack.c.b16 %v288, %v287
      %v304 = vpack.c.b16 %v290, %v289
      %v305 = vpack.c.b16 %v292, %v291
      %v306 = vpack.c.b16 %v294, %v293
      %v307 = vpack.c.b16 %v296, %v295
      %v308 = vpack.c.b16 %v298, %v297
      %v309 = vpack.c.b16 %v300, %v299
      %v310 = vpack.c.b16 %v302, %v301
      %319 = vmatprep.subr.bf16.mxu0 0
      %320 = vmatpush1.bf16.msra.mxu0 %v303
      %321 = vmatprep.subr.bf16.mxu0 0
      %322 = vmatpush1.bf16.msra.mxu0 %v304
      %323 = vmatprep.subr.bf16.mxu0 0
      %324 = vmatpush1.bf16.msra.mxu0 %v305
      %325 = vmatprep.subr.bf16.mxu0 0
      %326 = vmatpush1.bf16.msra.mxu0 %v306
      %327 = vmatprep.subr.bf16.mxu0 0
      %328 = vmatpush1.bf16.msra.mxu0 %v307
      %329 = vmatprep.subr.bf16.mxu0 0
      %330 = vmatpush1.bf16.msra.mxu0 %v308
      %331 = vmatprep.subr.bf16.mxu0 0
      %332 = vmatpush1.bf16.msra.mxu0 %v309
      %333 = vmatprep.subr.bf16.mxu0 0
      %334 = vmatpush1.bf16.msra.mxu0 %v310
      %335 = vmatprep.subr.bf16.mxu0 0
      %336 = vmatpush1.bf16.msra.mxu0 0
      %337 = vmatprep.subr.bf16.mxu0 0
      %338 = vmatpush1.bf16.msra.mxu0 0
      %339 = vmatprep.subr.bf16.mxu0 0
      %340 = vmatpush1.bf16.msra.mxu0 0
      %341 = vmatprep.subr.bf16.mxu0 0
      %342 = vmatpush1.bf16.msra.mxu0 0
      %343 = vmatprep.subr.bf16.mxu0 0
      %344 = vmatpush1.bf16.msra.mxu0 0
      %345 = vmatprep.subr.bf16.mxu0 0
      %346 = vmatpush1.bf16.msra.mxu0 0
      %347 = vmatprep.subr.bf16.mxu0 0
      %348 = vmatpush1.bf16.msra.mxu0 0
      %349 = vmatprep.subr.bf16.mxu0 0
      %350 = vmatpush1.bf16.msra.mxu0 0
      %351 = vmatprep.mubr.bf16.mxu0 0
      %352 = vmatmul.mubr.bf16.gmra.mrb[0].mxu0 %v263
      %v353 = vpop.f32.mrb[0].mxu0
      %v354 = vadd.f32 0.0, %v353
      %v355 = vpop.f32.mrb[0].mxu0
      %v356 = vpop.f32.mrb[0].mxu0
      %v357 = vadd.f32 0.0, %v356
      %v358 = vpop.f32.mrb[0].mxu0
      %359 = vmatprep.mubr.bf16.mxu0 0
      %360 = vmatmul.mubr.bf16.gmra.mrb[0].mxu0 %v264
      %v361 = vpop.f32.mrb[0].mxu0
      %v362 = vadd.f32 0.0, %v361
      %v363 = vpop.f32.mrb[0].mxu0
      %v364 = vpop.f32.mrb[0].mxu0
      %v365 = vadd.f32 0.0, %v364
      %v366 = vpop.f32.mrb[0].mxu0
      %367 = vmatprep.mubr.bf16.mxu0 0
      %368 = vmatmul.mubr.bf16.gmra.mrb[0].mxu0 %v265
      %v369 = vpop.f32.mrb[0].mxu0
      %v370 = vadd.f32 0.0, %v369
      %v371 = vpop.f32.mrb[0].mxu0
      %v372 = vpop.f32.mrb[0].mxu0
      %v373 = vadd.f32 0.0, %v372
      %v374 = vpop.f32.mrb[0].mxu0
      %375 = vmatprep.mubr.bf16.mxu0 0
      %376 = vmatmul.mubr.bf16.gmra.mrb[0].mxu0 %v266
      %v377 = vpop.f32.mrb[0].mxu0
      %v378 = vadd.f32 0.0, %v377
      %v379 = vpop.f32.mrb[0].mxu0
      %v380 = vpop.f32.mrb[0].mxu0
      %v381 = vadd.f32 0.0, %v380
      %v382 = vpop.f32.mrb[0].mxu0
      %383 = vdwg.mxu0
      %v384 = vadd.f32 %v231, %v354
      %v385 = vadd.f32 %v232, %v357
      %v386 = vadd.f32 %v233, %v362
      %v387 = vadd.f32 %v234, %v365
      %v388 = vadd.f32 %v235, %v370
      %v389 = vadd.f32 %v236, %v373
      %v390 = vadd.f32 %v237, %v378
      %v391 = vadd.f32 %v238, %v381
      %392 = vst [vmem:[#allocation2] sm:$0xff] %v384
      %393 = vst [vmem:[#allocation2 + $0x8] sm:$0xff] %v385
      %394 = vst [vmem:[#allocation2 + $0x10] sm:$0xff] %v386
      %395 = vst [vmem:[#allocation2 + $0x18] sm:$0xff] %v387
      %396 = vst [vmem:[#allocation2 + $0x20] sm:$0xff] %v388
      %397 = vst [vmem:[#allocation2 + $0x28] sm:$0xff] %v389
      %398 = vst [vmem:[#allocation2 + $0x30] sm:$0xff] %v390
      %399 = vst [vmem:[#allocation2 + $0x38] sm:$0xff] %v391
      // Predicated region
      $region37: #{encoder_forward.7} parent=31 // pred_check
        %p400 = pneg %p198
      $region38: #{encoder_forward.7} parent=31 // pred_check_branch
        %402 = sbr.rel (%p400) target = $region40
      $region39: #{encoder_forward.7} parent=31 // pred_region
        %v403 = vld [vmem:[%s2] sm:$0xff]
        %v404 = vld [vmem:[#allocation2] sm:$0xff]
        %v405 = vld [vmem:[#allocation2 + $0x8] sm:$0xff]
        %v406 = vld [vmem:[#allocation2 + $0x10] sm:$0xff]
        %v407 = vld [vmem:[#allocation2 + $0x18] sm:$0xff]
        %v408 = vld [vmem:[#allocation2 + $0x20] sm:$0xff]
        %v409 = vld [vmem:[#allocation2 + $0x28] sm:$0xff]
        %v410 = vld [vmem:[#allocation2 + $0x30] sm:$0xff]
        %v411 = vld [vmem:[#allocation2 + $0x38] sm:$0xff]
        %v412 = vlaneseq
        %v413 = vshrl.u32 %v412, 7
        %v414 = vsub.s32 0, %v413
        %v415 = vrot.slane %v403, %v414
        %v416 = vadd.f32 %v404, %v415
        %v417 = vadd.f32 %v405, %v415
        %v418 = vadd.f32 %v406, %v415
        %v419 = vadd.f32 %v407, %v415
        %v420 = vadd.f32 %v408, %v415
        %v421 = vadd.f32 %v409, %v415
        %v422 = vadd.f32 %v410, %v415
        %v423 = vadd.f32 %v411, %v415
        %424 = vadd.xlane.f32.xlu0 %v416
        %v425 = vpop.xlane.xlu0 %424
        %426 = vadd.xlane.f32.xlu0 %v417
        %v427 = vpop.xlane.xlu0 %426
        %428 = vadd.xlane.f32.xlu0 %v418
        %v429 = vpop.xlane.xlu0 %428
        %430 = vadd.xlane.f32.xlu0 %v419
        %v431 = vpop.xlane.xlu0 %430
        %432 = vadd.xlane.f32.xlu0 %v420
        %v433 = vpop.xlane.xlu0 %432
        %434 = vadd.xlane.f32.xlu0 %v421
        %v435 = vpop.xlane.xlu0 %434
        %436 = vadd.xlane.f32.xlu0 %v422
        %v437 = vpop.xlane.xlu0 %436
        %438 = vadd.xlane.f32.xlu0 %v423
        %v439 = vpop.xlane.xlu0 %438
        %v440 = vmul.f32 %v425, 0.125
        %v441 = vmul.f32 %v427, 0.125
        %v442 = vmul.f32 %v429, 0.125
        %v443 = vmul.f32 %v431, 0.125
        %v444 = vmul.f32 %v433, 0.125
        %v445 = vmul.f32 %v435, 0.125
        %v446 = vmul.f32 %v437, 0.125
        %v447 = vmul.f32 %v439, 0.125
        %v448 = vlaneseq
        %v449 = vand.u32 %v448, 127
        %vm450 = vcmp.lt.s32.totalorder %v449, 8
        %v451 = vsel %vm450, 1, 0
        %v452 = vcvt.s32.f32 %v451
        %v453 = vsub.f32 %v416, %v440
        %v454 = vsub.f32 %v417, %v441
        %v455 = vsub.f32 %v418, %v442
        %v456 = vsub.f32 %v419, %v443
        %v457 = vsub.f32 %v420, %v444
        %v458 = vsub.f32 %v421, %v445
        %v459 = vsub.f32 %v422, %v446
        %v460 = vsub.f32 %v423, %v447
        %v461 = vmul.f32 %v453, %v452
        %v462 = vmul.f32 %v454, %v452
        %v463 = vmul.f32 %v455, %v452
        %v464 = vmul.f32 %v456, %v452
        %v465 = vmul.f32 %v457, %v452
        %v466 = vmul.f32 %v458, %v452
        %v467 = vmul.f32 %v459, %v452
        %v468 = vmul.f32 %v460, %v452
        %v469 = vmul.f32 %v461, %v461
        %v470 = vmul.f32 %v462, %v462
        %v471 = vmul.f32 %v463, %v463
        %v472 = vmul.f32 %v464, %v464
        %v473 = vmul.f32 %v465, %v465
        %v474 = vmul.f32 %v466, %v466
        %v475 = vmul.f32 %v467, %v467
        %v476 = vmul.f32 %v468, %v468
        %477 = vadd.xlane.f32.xlu0 %v469
        %v478 = vpop.xlane.xlu0 %477
        %479 = vadd.xlane.f32.xlu0 %v470
        %v480 = vpop.xlane.xlu0 %479
        %481 = vadd.xlane.f32.xlu0 %v471
        %v482 = vpop.xlane.xlu0 %481
        %483 = vadd.xlane.f32.xlu0 %v472
        %v484 = vpop.xlane.xlu0 %483
        %485 = vadd.xlane.f32.xlu0 %v473
        %v486 = vpop.xlane.xlu0 %485
        %487 = vadd.xlane.f32.xlu0 %v474
        %v488 = vpop.xlane.xlu0 %487
        %489 = vadd.xlane.f32.xlu0 %v475
        %v490 = vpop.xlane.xlu0 %489
        %491 = vadd.xlane.f32.xlu0 %v476
        %v492 = vpop.xlane.xlu0 %491
        %v493 = vmul.f32 %v478, 0.125
        %v494 = vmul.f32 %v480, 0.125
        %v495 = vmul.f32 %v482, 0.125
        %v496 = vmul.f32 %v484, 0.125
        %v497 = vmul.f32 %v486, 0.125
        %v498 = vmul.f32 %v488, 0.125
        %v499 = vmul.f32 %v490, 0.125
        %v500 = vmul.f32 %v492, 0.125
        %v501 = vadd.f32 %v493, 1e-05
        %v502 = vadd.f32 %v494, 1e-05
        %v503 = vadd.f32 %v495, 1e-05
        %v504 = vadd.f32 %v496, 1e-05
        %v505 = vadd.f32 %v497, 1e-05
        %v506 = vadd.f32 %v498, 1e-05
        %v507 = vadd.f32 %v499, 1e-05
        %v508 = vadd.f32 %v500, 1e-05
        %v509 = vrsqrt.pop %v501
        %v510 = vrsqrt.pop %v502
        %v511 = vrsqrt.pop %v503
        %v512 = vrsqrt.pop %v504
        %v513 = vrsqrt.pop %v505
        %v514 = vrsqrt.pop %v506
        %v515 = vrsqrt.pop %v507
        %v516 = vrsqrt.pop %v508
        %v517 = vmul.f32 %v461, %v509
        %v518 = vmul.f32 %v462, %v510
        %v519 = vmul.f32 %v463, %v511
        %v520 = vmul.f32 %v464, %v512
        %v521 = vmul.f32 %v465, %v513
        %v522 = vmul.f32 %v466, %v514
        %v523 = vmul.f32 %v467, %v515
        %v524 = vmul.f32 %v468, %v516
        %v525 = vlaneseq
        %v526 = vshrl.u32 %v525, 7
        %v527 = vsub.s32 1, %v526
        %v528 = vrot.slane %v403, %v527
        %v529 = vmul.f32 %v517, %v528
        %v530 = vmul.f32 %v518, %v528
        %v531 = vmul.f32 %v519, %v528
        %v532 = vmul.f32 %v520, %v528
        %v533 = vmul.f32 %v521, %v528
        %v534 = vmul.f32 %v522, %v528
        %v535 = vmul.f32 %v523, %v528
        %v536 = vmul.f32 %v524, %v528
        %v537 = vlaneseq
        %v538 = vshrl.u32 %v537, 7
        %v539 = vsub.s32 2, %v538
        %v540 = vrot.slane %v403, %v539
        %v541 = vadd.f32 %v529, %v540
        %v542 = vadd.f32 %v530, %v540
        %v543 = vadd.f32 %v531, %v540
        %v544 = vadd.f32 %v532, %v540
        %v545 = vadd.f32 %v533, %v540
        %v546 = vadd.f32 %v534, %v540
        %v547 = vadd.f32 %v535, %v540
        %v548 = vadd.f32 %v536, %v540
        %v549 = vmax.f32 %v541, 0.0
        %v550 = vmax.f32 %v542, 0.0
        %v551 = vmax.f32 %v543, 0.0
        %v552 = vmax.f32 %v544, 0.0
        %v553 = vmax.f32 %v545, 0.0
        %v554 = vmax.f32 %v546, 0.0
        %v555 = vmax.f32 %v547, 0.0
        %v556 = vmax.f32 %v548, 0.0
        %557 = vst [vmem:[%s195] sm:$0xff] %v549
        %558 = vst [vmem:[%s195 + $0x8] sm:$0xff] %v550
        %559 = vst [vmem:[%s195 + $0x10] sm:$0xff] %v551
        %560 = vst [vmem:[%s195 + $0x18] sm:$0xff] %v552
        %561 = vst [vmem:[%s195 + $0x20] sm:$0xff] %v553
        %562 = vst [vmem:[%s195 + $0x28] sm:$0xff] %v554
        %563 = vst [vmem:[%s195 + $0x30] sm:$0xff] %v555
        %564 = vst [vmem:[%s195 + $0x38] sm:$0xff] %v556
      $region40: #{encoder_forward.7} parent=31 // pred_fallthru
        _
      %s565 = smul.u32 8, %s18
      %p566 = scmp.lt.s32.totalorder %s565, 15
      %s567 = scalar_select %p566, %s565, 15
      %s568 = smul.addr %s567, 8
      %s569 = scalar_lea.vmem %s3, %s568
      // Predicated region
      $region41: #{encoder_forward.7} parent=31 // pred_check
        %p570 = pneg %p114
      $region42: #{encoder_forward.7} parent=31 // pred_check_branch
        %572 = sbr.rel (%p570) target = $region44
      $region43: #{encoder_forward.7} parent=31 // pred_region
        %s573 = smul.u32 8, %s18
      $region44: #{encoder_forward.7} parent=31 // pred_fallthru
        _
    $region32: #{encoder_forward.7} parent=5 // pred_fallthru
      _
    %p574 = scmp.le.s32.totalorder 2, %s9
    // Predicated region
    $region45: #{encoder_forward.7} parent=5 // pred_check
      %p575 = pneg %p574
    $region46: #{encoder_forward.7} parent=5 // pred_check_branch
      %577 = sbr.rel (%p575) target = $region48
    $region47: #{encoder_forward.7} parent=5 // pred_region
      %s578 = ssub.s32 %s9, 2
      // Predicated region
      $region49: #{encoder_forward.7} parent=47 // pred_check
        %p579 = pneg %p120
      $region50: #{encoder_forward.7} parent=47 // pred_check_branch
        %581 = sbr.rel (%p579) target = $region52
      $region51: #{encoder_forward.7} parent=47 // pred_region
        %s582 = smul.u32 8, %s20
        %p583 = scmp.lt.s32.totalorder %s582, 15
        %s584 = scalar_select %p583, %s582, 15
        %s585 = smul.addr %s584, 8
        %s586 = scalar_lea.vmem %s3, %s585
      $region52: #{encoder_forward.7} parent=47 // pred_fallthru
        _
    $region48: #{encoder_forward.7} parent=5 // pred_fallthru
      _
  $region6: #{encoder_forward.7} parent=0 // loop_footer
    %s13 = sadd.s32 1, %s9
  $region7: #{encoder_forward.7} parent=0 // loop_footer_branch
    %8 = sbr.rel target = $region3
  $region8: #{encoder_forward.7} parent=0 // loop_exit
    _

// kernel: encoder_forward.5
$region0: #{encoder_forward.5}
  #allocation0 [shape = 'u32[]', space=smem, size = 0x4, offset = 0x4, fixed_abs, tag = 'smem constant byte address 0x4 - core index']
  #allocation1 [shape = 'u32[144,128]{1,0:T(1,128)}', space=vmem, size = 0x12000, scoped, tag = 'internal scratch']
  #allocation2 [shape = 'f32[64,128]{1,0:T(8,128)}', space=vmem, size = 0x8000, scoped, tag = 'scratch operand']
  %s0 = inlined_call_operand.vmem [shape: bf16[128,128], index: 0, kind: input, shape index: {}]
  %s1 = inlined_call_operand.vmem [shape: bf16[128,128], index: 1, kind: input, shape index: {}]
  %s2 = inlined_call_operand.vmem [shape: f32[8,128], index: 2, kind: input, shape index: {}]
  %s3 = inlined_call_operand.vmem [shape: bf16[128,128], index: 3, kind: output, shape index: {}]
  %s4 = sld [smem:[#allocation0]]
  $region53: #{encoder_forward.5} parent=0
    _
  %s6 = ssub.s32 1, %s4
  %s7 = scalar_select 0, %s6, %s4
  loop: start=0, step=1, limit=4
  $region2: #{encoder_forward.5} parent=0 // loop_pre_header
    _
  $region3: #{encoder_forward.5} parent=0 // loop_header
    %s9 = sphi 0, %s13
    %p10 = scmp.ge.s32.totalorder %s9, 4
    %s16 = sphi 0, %s28
    %s17 = sphi 0, %s24
    %s18 = sphi 0, %s16
    %s19 = sphi 0, %s17
    %s20 = sphi 0, %s18
    %s21 = sphi 0, %s19
    %s33 = sphi 0, %s35
    %s36 = sphi 0, %s33
    %s37 = sphi 0, %s36
    %s53 = sphi 0, %s37
    %s57 = sphi 0, %s57
    %s59 = sphi 0, %s57
    %s60 = sphi 0, %s59
    %s74 = sphi 0, %s60
    %s78 = sphi 0, %s78
    %s80 = sphi 0, %s78
    %s81 = sphi 0, %s80
    %s95 = sphi 0, %s81
    %s101 = sphi 0, %s103
    %s104 = sphi 0, %s101
    %s105 = sphi 0, %s104
    %s121 = sphi 0, %s105
  $region4: #{encoder_forward.5} parent=0 // loop_header_branch
    %12 = sbr.rel (%p10) target = $region8
  $region5: #{encoder_forward.5} parent=0 // loop_body
    %s14 = ssub.s32 %s9, 1
    %s15 = ssub.s32 %s9, 2
    %s22 = sadd.s32 1, %s17
    %p23 = scmp.ge.s32.totalorder %s22, 1
    %s24 = scalar_select %p23, 0, %s22
    %s25 = sadd.s32 1, %s16
    %s26 = scalar_select %p23, %s25, %s16
    %p27 = scmp.ge.s32.totalorder %s26, 2
    %s28 = scalar_select %p27, 0, %s26
    %s29 = ssub.s32 %s16, %s28
    %s30 = ssub.s32 %s17, %s24
    %s31 = sor.u32 %s29, %s30
    %p32 = scmp.eq.s32.totalorder %s31, 0
    %s34 = sadd.s32 %s33, 1
    %s35 = scalar_select %p32, %s33, %s34
    %p38 = pneg %p32
    %p39 = scmp.eq.s32.totalorder %s9, 1
    %p40 = por %p38, %p39
    %p41 = scmp.ne.s32.totalorder %s33, %s36
    %p42 = scmp.eq.s32.totalorder %s9, 0
    %p43 = por %p41, %p42
    %p44 = scmp.ne.s32.totalorder %s33, %s36
    %p45 = scmp.eq.s32.totalorder %s14, 1
    %p46 = por %p44, %p45
    %p47 = scmp.ne.s32.totalorder %s36, %s37
    %p48 = scmp.eq.s32.totalorder %s14, 0
    %p49 = por %p47, %p48
    %p50 = scmp.ne.s32.totalorder %s36, %s37
    %p51 = scmp.eq.s32.totalorder %s15, 1
    %p52 = por %p50, %p51
    %p54 = scmp.ne.s32.totalorder %s37, %s53
    %p55 = scmp.eq.s32.totalorder %s15, 0
    %p56 = por %p54, %p55
    %s58 = sadd.s32 %s57, 1
    %p61 = scmp.eq.s32.totalorder %s9, 1
    %p62 = scmp.ne.s32.totalorder %s57, %s59
    %p63 = scmp.eq.s32.totalorder %s9, 0
    %p64 = por %p62, %p63
    %p65 = scmp.ne.s32.totalorder %s57, %s59
    %p66 = scmp.eq.s32.totalorder %s14, 1
    %p67 = por %p65, %p66
    %p68 = scmp.ne.s32.totalorder %s59, %s60
    %p69 = scmp.eq.s32.totalorder %s14, 0
    %p70 = por %p68, %p69
    %p71 = scmp.ne.s32.totalorder %s59, %s60
    %p72 = scmp.eq.s32.totalorder %s15, 1
    %p73 = por %p71, %p72
    %p75 = scmp.ne.s32.totalorder %s60, %s74
    %p76 = scmp.eq.s32.totalorder %s15, 0
    %p77 = por %p75, %p76
    %s79 = sadd.s32 %s78, 1
    %p82 = scmp.eq.s32.totalorder %s9, 1
    %p83 = scmp.ne.s32.totalorder %s78, %s80
    %p84 = scmp.eq.s32.totalorder %s9, 0
    %p85 = por %p83, %p84
    %p86 = scmp.ne.s32.totalorder %s78, %s80
    %p87 = scmp.eq.s32.totalorder %s14, 1
    %p88 = por %p86, %p87
    %p89 = scmp.ne.s32.totalorder %s80, %s81
    %p90 = scmp.eq.s32.totalorder %s14, 0
    %p91 = por %p89, %p90
    %p92 = scmp.ne.s32.totalorder %s80, %s81
    %p93 = scmp.eq.s32.totalorder %s15, 1
    %p94 = por %p92, %p93
    %p96 = scmp.ne.s32.totalorder %s81, %s95
    %p97 = scmp.eq.s32.totalorder %s15, 0
    %p98 = por %p96, %p97
    %s99 = ssub.s32 %s16, %s28
    %p100 = scmp.eq.s32.totalorder %s99, 0
    %s102 = sadd.s32 %s101, 1
    %s103 = scalar_select %p100, %s101, %s102
    %p106 = pneg %p100
    %p107 = scmp.eq.s32.totalorder %s9, 1
    %p108 = por %p106, %p107
    %p109 = scmp.ne.s32.totalorder %s101, %s104
    %p110 = scmp.eq.s32.totalorder %s9, 0
    %p111 = por %p109, %p110
    %p112 = scmp.ne.s32.totalorder %s101, %s104
    %p113 = scmp.eq.s32.totalorder %s14, 1
    %p114 = por %p112, %p113
    %p115 = scmp.ne.s32.totalorder %s104, %s105
    %p116 = scmp.eq.s32.totalorder %s14, 0
    %p117 = por %p115, %p116
    %p118 = scmp.ne.s32.totalorder %s104, %s105
    %p119 = scmp.eq.s32.totalorder %s15, 1
    %p120 = por %p118, %p119
    %p122 = scmp.ne.s32.totalorder %s105, %s121
    %p123 = scmp.eq.s32.totalorder %s15, 0
    %p124 = por %p122, %p123
    %p125 = scmp.le.s32.totalorder 1, %s9
    %p126 = scmp.lt.s32.totalorder %s9, 3
    %p127 = pnand %p125, %p126
    %p128 = pneg %p127
    // Predicated region
    $region9: #{encoder_forward.5} parent=5 // pred_check
      _
    $region10: #{encoder_forward.5} parent=5 // pred_check_branch
      %130 = sbr.rel (%p127) target = $region12
    $region11: #{encoder_forward.5} parent=5 // pred_region
      %s131 = ssub.s32 %s9, 1
      // Predicated region
      $region13: #{encoder_forward.5} parent=11 // pred_check
        %p132 = pneg %p70
      $region14: #{encoder_forward.5} parent=11 // pred_check_branch
        %134 = sbr.rel (%p132) target = $region16
      $region15: #{encoder_forward.5} parent=11 // pred_region
        _
      $region16: #{encoder_forward.5} parent=11 // pred_fallthru
        _
      // Predicated region
      $region17: #{encoder_forward.5} parent=11 // pred_check
        %p135 = pneg %p91
      $region18: #{encoder_forward.5} parent=11 // pred_check_branch
        %137 = sbr.rel (%p135) target = $region20
      $region19: #{encoder_forward.5} parent=11 // pred_region
        _
      $region20: #{encoder_forward.5} parent=11 // pred_fallthru
        _
    $region12: #{encoder_forward.5} parent=5 // pred_fallthru
      _
    %p138 = scmp.lt.s32.totalorder %s9, 2
    // Predicated region
    $region21: #{encoder_forward.5} parent=5 // pred_check
      %p139 = pneg %p138
    $region22: #{encoder_forward.5} parent=5 // pred_check_branch
      %141 = sbr.rel (%p139) target = $region24
    $region23: #{encoder_forward.5} parent=5 // pred_region
      // Predicated region
      $region25: #{encoder_forward.5} parent=23 // pred_check
        %p142 = pneg %p43
      $region26: #{encoder_forward.5} parent=23 // pred_check_branch
        %144 = sbr.rel (%p142) target = $region28
      $region27: #{encoder_forward.5} parent=23 // pred_region
        %s145 = smul.u32 8, %s16
        %p146 = scmp.lt.s32.totalorder %s145, 15
        %s147 = scalar_select %p146, %s145, 15
        %p148 = scmp.lt.s32.totalorder %s17, 0
        %s149 = scalar_select %p148, %s17, 0
        %s150 = sadd.s32 %s149, %s147
        %s151 = smul.addr %s150, 4
        %s152 = scalar_lea.vmem %s0, %s151
        %s153 = smul.u32 8, %s16
      $region28: #{encoder_forward.5} parent=23 // pred_fallthru
        _
    $region24: #{encoder_forward.5} parent=5 // pred_fallthru
      _
    %p154 = scmp.le.s32.totalorder 1, %s9
    %p155 = scmp.lt.s32.totalorder %s9, 3
    %p156 = pnand %p154, %p155
    %p157 = pneg %p156
    // Predicated region
    $region29: #{encoder_forward.5} parent=5 // pred_check
      _
    $region30: #{encoder_forward.5} parent=5 // pred_check_branch
      %159 = sbr.rel (%p156) target = $region32
    $region31: #{encoder_forward.5} parent=5 // pred_region
      %s160 = ssub.s32 %s9, 1
      %s161 = smul.u32 8, %s18
      %p162 = scmp.lt.s32.totalorder %s161, 15
      %s163 = scalar_select %p162, %s161, 15
      %p164 = scmp.lt.s32.totalorder %s19, 0
      %s165 = scalar_select %p164, %s19, 0
      %s166 = sadd.s32 %s165, %s163
      %s167 = smul.addr %s166, 4
      %s168 = scalar_lea.vmem %s0, %s167
      %p169 = pneg %p49
      %p170 = pneg %p46
      %p171 = pneg %p70
      %p172 = pneg %p67
      %p173 = pneg %p91
      %p174 = pneg %p88
      %p175 = pneg %p117
      %p176 = pneg %p114
      %s177 = smul.u32 8, %s18
      %p178 = scmp.lt.s32.totalorder %s177, 15
      %s179 = scalar_select %p178, %s177, 15
      %s180 = smul.addr %s179, 4
      %s181 = scalar_lea.vmem %s3, %s180
      %s182 = smul.u32 8, %s18
      %p183 = scmp.lt.s32.totalorder %s182, 15
      %s184 = scalar_select %p183, %s182, 15
      %p185 = scmp.lt.s32.totalorder %s19, 0
      %s186 = scalar_select %p185, %s19, 0
      %s187 = sadd.s32 %s186, %s184
      %s188 = smul.addr %s187, 4
      %s189 = scalar_lea.vmem %s0, %s188
      %s190 = smul.u32 8, %s18
      %s191 = smul.u32 8, %s18
      %p192 = scmp.lt.s32.totalorder %s191, 15
      %s193 = scalar_select %p192, %s191, 15
      %s194 = smul.addr %s193, 4
      %s195 = scalar_lea.vmem %s3, %s194
      %s196 = smul.u32 8, %s18
      %p198 = scmp.eq.s32.totalorder %s19, 0
      // Predicated region
      $region33: #{encoder_forward.5} parent=31 // pred_check
        %p199 = pneg %p198
      $region34: #{encoder_forward.5} parent=31 // pred_check_branch
        %201 = sbr.rel (%p199) target = $region36
      $region35: #{encoder_forward.5} parent=31 // pred_region
        %202 = vst [vmem:[#allocation2] sm:$0xff] 0.0
        %203 = vst [vmem:[#allocation2 + $0x8] sm:$0xff] 0.0
        %204 = vst [vmem:[#allocation2 + $0x10] sm:$0xff] 0.0
        %205 = vst [vmem:[#allocation2 + $0x18] sm:$0xff] 0.0
        %206 = vst [vmem:[#allocation2 + $0x20] sm:$0xff] 0.0
        %207 = vst [vmem:[#allocation2 + $0x28] sm:$0xff] 0.0
        %208 = vst [vmem:[#allocation2 + $0x30] sm:$0xff] 0.0
        %209 = vst [vmem:[#allocation2 + $0x38] sm:$0xff] 0.0
      $region36: #{encoder_forward.5} parent=31 // pred_fallthru
        _
      %s210 = smul.u32 %s19, 128
      %s211 = sshra.s32 %s210, 3
      %s212 = sand.u32 %s210, 7
      %s213 = smul.addr %s211, 4
      %s214 = scalar_lea.vmem %s1, %s213
      %v215 = vld [vmem:[%s214] sm:$0xf]
      %v216 = vld [vmem:[%s214 + $0x4] sm:$0xf]
      %v217 = vld [vmem:[%s214 + $0x8] sm:$0xf]
      %v218 = vld [vmem:[%s214 + $0xc] sm:$0xf]
      %v219 = vld [vmem:[%s214 + $0x10] sm:$0xf]
      %v220 = vld [vmem:[%s214 + $0x14] sm:$0xf]
      %v221 = vld [vmem:[%s214 + $0x18] sm:$0xf]
      %v222 = vld [vmem:[%s214 + $0x1c] sm:$0xf]
      %v223 = vld [vmem:[%s214 + $0x20] sm:$0xf]
      %v224 = vld [vmem:[%s214 + $0x24] sm:$0xf]
      %v225 = vld [vmem:[%s214 + $0x28] sm:$0xf]
      %v226 = vld [vmem:[%s214 + $0x2c] sm:$0xf]
      %v227 = vld [vmem:[%s214 + $0x30] sm:$0xf]
      %v228 = vld [vmem:[%s214 + $0x34] sm:$0xf]
      %v229 = vld [vmem:[%s214 + $0x38] sm:$0xf]
      %v230 = vld [vmem:[%s214 + $0x3c] sm:$0xf]
      %v231 = vld [vmem:[#allocation2] sm:$0xff]
      %v232 = vld [vmem:[#allocation2 + $0x8] sm:$0xff]
      %v233 = vld [vmem:[#allocation2 + $0x10] sm:$0xff]
      %v234 = vld [vmem:[#allocation2 + $0x18] sm:$0xff]
      %v235 = vld [vmem:[#allocation2 + $0x20] sm:$0xff]
      %v236 = vld [vmem:[#allocation2 + $0x28] sm:$0xff]
      %v237 = vld [vmem:[#allocation2 + $0x30] sm:$0xff]
      %v238 = vld [vmem:[#allocation2 + $0x38] sm:$0xff]
      %v239 = vld [vmem:[%s189] sm:$0xf]
      %v240 = vld [vmem:[%s189 + $0x4] sm:$0xf]
      %v241 = vld [vmem:[%s189 + $0x8] sm:$0xf]
      %v242 = vld [vmem:[%s189 + $0xc] sm:$0xf]
      %v243 = vld [vmem:[%s189 + $0x10] sm:$0xf]
      %v244 = vld [vmem:[%s189 + $0x14] sm:$0xf]
      %v245 = vld [vmem:[%s189 + $0x18] sm:$0xf]
      %v246 = vld [vmem:[%s189 + $0x1c] sm:$0xf]
      %v255 = vunpack.c.l.b16 %v239
      %v256 = vunpack.c.l.b16 %v240
      %v257 = vunpack.c.l.b16 %v241
      %v258 = vunpack.c.l.b16 %v242
      %v259 = vunpack.c.l.b16 %v243
      %v260 = vunpack.c.l.b16 %v244
      %v261 = vunpack.c.l.b16 %v245
      %v262 = vunpack.c.l.b16 %v246
      %v263 = vpack.c.b16 %v256, %v255
      %v264 = vpack.c.b16 %v258, %v257
      %v265 = vpack.c.b16 %v260, %v259
      %v266 = vpack.c.b16 %v262, %v261
      %v287 = vunpack.c.l.b16 %v215
      %v288 = vunpack.c.l.b16 %v216
      %v289 = vunpack.c.l.b16 %v217
      %v290 = vunpack.c.l.b16 %v218
      %v291 = vunpack.c.l.b16 %v219
      %v292 = vunpack.c.l.b16 %v220
      %v293 = vunpack.c.l.b16 %v221
      %v294 = vunpack.c.l.b16 %v222
      %v295 = vunpack.c.l.b16 %v223
      %v296 = vunpack.c.l.b16 %v224
      %v297 = vunpack.c.l.b16 %v225
      %v298 = vunpack.c.l.b16 %v226
      %v299 = vunpack.c.l.b16 %v227
      %v300 = vunpack.c.l.b16 %v228
      %v301 = vunpack.c.l.b16 %v229
      %v302 = vunpack.c.l.b16 %v230
      %v303 = vpack.c.b16 %v288, %v287
      %v304 = vpack.c.b16 %v290, %v289
      %v305 = vpack.c.b16 %v292, %v291
      %v306 = vpack.c.b16 %v294, %v293
      %v307 = vpack.c.b16 %v296, %v295
      %v308 = vpack.c.b16 %v298, %v297
      %v309 = vpack.c.b16 %v300, %v299
      %v310 = vpack.c.b16 %v302, %v301
      %319 = vmatprep.subr.bf16.mxu0 0
      %320 = vmatpush1.bf16.msra.mxu0 %v303
      %321 = vmatprep.subr.bf16.mxu0 0
      %322 = vmatpush1.bf16.msra.mxu0 %v304
      %323 = vmatprep.subr.bf16.mxu0 0
      %324 = vmatpush1.bf16.msra.mxu0 %v305
      %325 = vmatprep.subr.bf16.mxu0 0
      %326 = vmatpush1.bf16.msra.mxu0 %v306
      %327 = vmatprep.subr.bf16.mxu0 0
      %328 = vmatpush1.bf16.msra.mxu0 %v307
      %329 = vmatprep.subr.bf16.mxu0 0
      %330 = vmatpush1.bf16.msra.mxu0 %v308
      %331 = vmatprep.subr.bf16.mxu0 0
      %332 = vmatpush1.bf16.msra.mxu0 %v309
      %333 = vmatprep.subr.bf16.mxu0 0
      %334 = vmatpush1.bf16.msra.mxu0 %v310
      %335 = vmatprep.subr.bf16.mxu0 0
      %336 = vmatpush1.bf16.msra.mxu0 0
      %337 = vmatprep.subr.bf16.mxu0 0
      %338 = vmatpush1.bf16.msra.mxu0 0
      %339 = vmatprep.subr.bf16.mxu0 0
      %340 = vmatpush1.bf16.msra.mxu0 0
      %341 = vmatprep.subr.bf16.mxu0 0
      %342 = vmatpush1.bf16.msra.mxu0 0
      %343 = vmatprep.subr.bf16.mxu0 0
      %344 = vmatpush1.bf16.msra.mxu0 0
      %345 = vmatprep.subr.bf16.mxu0 0
      %346 = vmatpush1.bf16.msra.mxu0 0
      %347 = vmatprep.subr.bf16.mxu0 0
      %348 = vmatpush1.bf16.msra.mxu0 0
      %349 = vmatprep.subr.bf16.mxu0 0
      %350 = vmatpush1.bf16.msra.mxu0 0
      %351 = vmatprep.mubr.bf16.mxu0 0
      %352 = vmatmul.mubr.bf16.gmra.mrb[0].mxu0 %v263
      %v353 = vpop.f32.mrb[0].mxu0
      %v354 = vadd.f32 0.0, %v353
      %v355 = vpop.f32.mrb[0].mxu0
      %v356 = vpop.f32.mrb[0].mxu0
      %v357 = vadd.f32 0.0, %v356
      %v358 = vpop.f32.mrb[0].mxu0
      %359 = vmatprep.mubr.bf16.mxu0 0
      %360 = vmatmul.mubr.bf16.gmra.mrb[0].mxu0 %v264
      %v361 = vpop.f32.mrb[0].mxu0
      %v362 = vadd.f32 0.0, %v361
      %v363 = vpop.f32.mrb[0].mxu0
      %v364 = vpop.f32.mrb[0].mxu0
      %v365 = vadd.f32 0.0, %v364
      %v366 = vpop.f32.mrb[0].mxu0
      %367 = vmatprep.mubr.bf16.mxu0 0
      %368 = vmatmul.mubr.bf16.gmra.mrb[0].mxu0 %v265
      %v369 = vpop.f32.mrb[0].mxu0
      %v370 = vadd.f32 0.0, %v369
      %v371 = vpop.f32.mrb[0].mxu0
      %v372 = vpop.f32.mrb[0].mxu0
      %v373 = vadd.f32 0.0, %v372
      %v374 = vpop.f32.mrb[0].mxu0
      %375 = vmatprep.mubr.bf16.mxu0 0
      %376 = vmatmul.mubr.bf16.gmra.mrb[0].mxu0 %v266
      %v377 = vpop.f32.mrb[0].mxu0
      %v378 = vadd.f32 0.0, %v377
      %v379 = vpop.f32.mrb[0].mxu0
      %v380 = vpop.f32.mrb[0].mxu0
      %v381 = vadd.f32 0.0, %v380
      %v382 = vpop.f32.mrb[0].mxu0
      %383 = vdwg.mxu0
      %v384 = vadd.f32 %v231, %v354
      %v385 = vadd.f32 %v232, %v357
      %v386 = vadd.f32 %v233, %v362
      %v387 = vadd.f32 %v234, %v365
      %v388 = vadd.f32 %v235, %v370
      %v389 = vadd.f32 %v236, %v373
      %v390 = vadd.f32 %v237, %v378
      %v391 = vadd.f32 %v238, %v381
      %392 = vst [vmem:[#allocation2] sm:$0xff] %v384
      %393 = vst [vmem:[#allocation2 + $0x8] sm:$0xff] %v385
      %394 = vst [vmem:[#allocation2 + $0x10] sm:$0xff] %v386
      %395 = vst [vmem:[#allocation2 + $0x18] sm:$0xff] %v387
      %396 = vst [vmem:[#allocation2 + $0x20] sm:$0xff] %v388
      %397 = vst [vmem:[#allocation2 + $0x28] sm:$0xff] %v389
      %398 = vst [vmem:[#allocation2 + $0x30] sm:$0xff] %v390
      %399 = vst [vmem:[#allocation2 + $0x38] sm:$0xff] %v391
      // Predicated region
      $region37: #{encoder_forward.5} parent=31 // pred_check
        %p400 = pneg %p198
      $region38: #{encoder_forward.5} parent=31 // pred_check_branch
        %402 = sbr.rel (%p400) target = $region40
      $region39: #{encoder_forward.5} parent=31 // pred_region
        %v403 = vld [vmem:[%s2] sm:$0xff]
        %v404 = vld [vmem:[#allocation2] sm:$0xff]
        %v405 = vld [vmem:[#allocation2 + $0x8] sm:$0xff]
        %v406 = vld [vmem:[#allocation2 + $0x10] sm:$0xff]
        %v407 = vld [vmem:[#allocation2 + $0x18] sm:$0xff]
        %v408 = vld [vmem:[#allocation2 + $0x20] sm:$0xff]
        %v409 = vld [vmem:[#allocation2 + $0x28] sm:$0xff]
        %v410 = vld [vmem:[#allocation2 + $0x30] sm:$0xff]
        %v411 = vld [vmem:[#allocation2 + $0x38] sm:$0xff]
        %v412 = vlaneseq
        %v413 = vshrl.u32 %v412, 7
        %v414 = vsub.s32 0, %v413
        %v415 = vrot.slane %v403, %v414
        %v416 = vadd.f32 %v404, %v415
        %v417 = vadd.f32 %v405, %v415
        %v418 = vadd.f32 %v406, %v415
        %v419 = vadd.f32 %v407, %v415
        %v420 = vadd.f32 %v408, %v415
        %v421 = vadd.f32 %v409, %v415
        %v422 = vadd.f32 %v410, %v415
        %v423 = vadd.f32 %v411, %v415
        %424 = vadd.xlane.f32.xlu0 %v416
        %v425 = vpop.xlane.xlu0 %424
        %426 = vadd.xlane.f32.xlu0 %v417
        %v427 = vpop.xlane.xlu0 %426
        %428 = vadd.xlane.f32.xlu0 %v418
        %v429 = vpop.xlane.xlu0 %428
        %430 = vadd.xlane.f32.xlu0 %v419
        %v431 = vpop.xlane.xlu0 %430
        %432 = vadd.xlane.f32.xlu0 %v420
        %v433 = vpop.xlane.xlu0 %432
        %434 = vadd.xlane.f32.xlu0 %v421
        %v435 = vpop.xlane.xlu0 %434
        %436 = vadd.xlane.f32.xlu0 %v422
        %v437 = vpop.xlane.xlu0 %436
        %438 = vadd.xlane.f32.xlu0 %v423
        %v439 = vpop.xlane.xlu0 %438
        %v440 = vmul.f32 %v425, 0.0625
        %v441 = vmul.f32 %v427, 0.0625
        %v442 = vmul.f32 %v429, 0.0625
        %v443 = vmul.f32 %v431, 0.0625
        %v444 = vmul.f32 %v433, 0.0625
        %v445 = vmul.f32 %v435, 0.0625
        %v446 = vmul.f32 %v437, 0.0625
        %v447 = vmul.f32 %v439, 0.0625
        %v448 = vlaneseq
        %v449 = vand.u32 %v448, 127
        %vm450 = vcmp.lt.s32.totalorder %v449, 16
        %v451 = vsel %vm450, 1, 0
        %v452 = vcvt.s32.f32 %v451
        %v453 = vsub.f32 %v416, %v440
        %v454 = vsub.f32 %v417, %v441
        %v455 = vsub.f32 %v418, %v442
        %v456 = vsub.f32 %v419, %v443
        %v457 = vsub.f32 %v420, %v444
        %v458 = vsub.f32 %v421, %v445
        %v459 = vsub.f32 %v422, %v446
        %v460 = vsub.f32 %v423, %v447
        %v461 = vmul.f32 %v453, %v452
        %v462 = vmul.f32 %v454, %v452
        %v463 = vmul.f32 %v455, %v452
        %v464 = vmul.f32 %v456, %v452
        %v465 = vmul.f32 %v457, %v452
        %v466 = vmul.f32 %v458, %v452
        %v467 = vmul.f32 %v459, %v452
        %v468 = vmul.f32 %v460, %v452
        %v469 = vmul.f32 %v461, %v461
        %v470 = vmul.f32 %v462, %v462
        %v471 = vmul.f32 %v463, %v463
        %v472 = vmul.f32 %v464, %v464
        %v473 = vmul.f32 %v465, %v465
        %v474 = vmul.f32 %v466, %v466
        %v475 = vmul.f32 %v467, %v467
        %v476 = vmul.f32 %v468, %v468
        %477 = vadd.xlane.f32.xlu0 %v469
        %v478 = vpop.xlane.xlu0 %477
        %479 = vadd.xlane.f32.xlu0 %v470
        %v480 = vpop.xlane.xlu0 %479
        %481 = vadd.xlane.f32.xlu0 %v471
        %v482 = vpop.xlane.xlu0 %481
        %483 = vadd.xlane.f32.xlu0 %v472
        %v484 = vpop.xlane.xlu0 %483
        %485 = vadd.xlane.f32.xlu0 %v473
        %v486 = vpop.xlane.xlu0 %485
        %487 = vadd.xlane.f32.xlu0 %v474
        %v488 = vpop.xlane.xlu0 %487
        %489 = vadd.xlane.f32.xlu0 %v475
        %v490 = vpop.xlane.xlu0 %489
        %491 = vadd.xlane.f32.xlu0 %v476
        %v492 = vpop.xlane.xlu0 %491
        %v493 = vmul.f32 %v478, 0.0625
        %v494 = vmul.f32 %v480, 0.0625
        %v495 = vmul.f32 %v482, 0.0625
        %v496 = vmul.f32 %v484, 0.0625
        %v497 = vmul.f32 %v486, 0.0625
        %v498 = vmul.f32 %v488, 0.0625
        %v499 = vmul.f32 %v490, 0.0625
        %v500 = vmul.f32 %v492, 0.0625
        %v501 = vadd.f32 %v493, 1e-05
        %v502 = vadd.f32 %v494, 1e-05
        %v503 = vadd.f32 %v495, 1e-05
        %v504 = vadd.f32 %v496, 1e-05
        %v505 = vadd.f32 %v497, 1e-05
        %v506 = vadd.f32 %v498, 1e-05
        %v507 = vadd.f32 %v499, 1e-05
        %v508 = vadd.f32 %v500, 1e-05
        %v509 = vrsqrt.pop %v501
        %v510 = vrsqrt.pop %v502
        %v511 = vrsqrt.pop %v503
        %v512 = vrsqrt.pop %v504
        %v513 = vrsqrt.pop %v505
        %v514 = vrsqrt.pop %v506
        %v515 = vrsqrt.pop %v507
        %v516 = vrsqrt.pop %v508
        %v517 = vmul.f32 %v461, %v509
        %v518 = vmul.f32 %v462, %v510
        %v519 = vmul.f32 %v463, %v511
        %v520 = vmul.f32 %v464, %v512
        %v521 = vmul.f32 %v465, %v513
        %v522 = vmul.f32 %v466, %v514
        %v523 = vmul.f32 %v467, %v515
        %v524 = vmul.f32 %v468, %v516
        %v525 = vlaneseq
        %v526 = vshrl.u32 %v525, 7
        %v527 = vsub.s32 1, %v526
        %v528 = vrot.slane %v403, %v527
        %v529 = vmul.f32 %v517, %v528
        %v530 = vmul.f32 %v518, %v528
        %v531 = vmul.f32 %v519, %v528
        %v532 = vmul.f32 %v520, %v528
        %v533 = vmul.f32 %v521, %v528
        %v534 = vmul.f32 %v522, %v528
        %v535 = vmul.f32 %v523, %v528
        %v536 = vmul.f32 %v524, %v528
        %v537 = vlaneseq
        %v538 = vshrl.u32 %v537, 7
        %v539 = vsub.s32 2, %v538
        %v540 = vrot.slane %v403, %v539
        %v541 = vadd.f32 %v529, %v540
        %v542 = vadd.f32 %v530, %v540
        %v543 = vadd.f32 %v531, %v540
        %v544 = vadd.f32 %v532, %v540
        %v545 = vadd.f32 %v533, %v540
        %v546 = vadd.f32 %v534, %v540
        %v547 = vadd.f32 %v535, %v540
        %v548 = vadd.f32 %v536, %v540
        %v549 = vmax.f32 %v541, 0.0
        %v550 = vmax.f32 %v542, 0.0
        %v551 = vmax.f32 %v543, 0.0
        %v552 = vmax.f32 %v544, 0.0
        %v553 = vmax.f32 %v545, 0.0
        %v554 = vmax.f32 %v546, 0.0
        %v555 = vmax.f32 %v547, 0.0
        %v556 = vmax.f32 %v548, 0.0
        %v557 = vpack.c.bf16 %v550, %v549
        %v558 = vpack.c.bf16 %v552, %v551
        %v559 = vpack.c.bf16 %v554, %v553
        %v560 = vpack.c.bf16 %v556, %v555
        %v565 = vunpack.c.l.b16 %v557
        %v566 = vunpack.c.h.b16 %v557
        %v567 = vunpack.c.l.b16 %v558
        %v568 = vunpack.c.h.b16 %v558
        %v569 = vunpack.c.l.b16 %v559
        %v570 = vunpack.c.h.b16 %v559
        %v571 = vunpack.c.l.b16 %v560
        %v572 = vunpack.c.h.b16 %v560
        %v573 = vpack.c.b16 %v565, %v565
        %v574 = vpack.c.b16 %v566, %v566
        %v575 = vpack.c.b16 %v567, %v567
        %v576 = vpack.c.b16 %v568, %v568
        %v577 = vpack.c.b16 %v569, %v569
        %v578 = vpack.c.b16 %v570, %v570
        %v579 = vpack.c.b16 %v571, %v571
        %v580 = vpack.c.b16 %v572, %v572
        %589 = vst [vmem:[%s195] sm:$0xf] %v573
        %590 = vst [vmem:[%s195 + $0x4] sm:$0xf] %v574
        %591 = vst [vmem:[%s195 + $0x8] sm:$0xf] %v575
        %592 = vst [vmem:[%s195 + $0xc] sm:$0xf] %v576
        %593 = vst [vmem:[%s195 + $0x10] sm:$0xf] %v577
        %594 = vst [vmem:[%s195 + $0x14] sm:$0xf] %v578
        %595 = vst [vmem:[%s195 + $0x18] sm:$0xf] %v579
        %596 = vst [vmem:[%s195 + $0x1c] sm:$0xf] %v580
      $region40: #{encoder_forward.5} parent=31 // pred_fallthru
        _
      %s597 = smul.u32 8, %s18
      %p598 = scmp.lt.s32.totalorder %s597, 15
      %s599 = scalar_select %p598, %s597, 15
      %s600 = smul.addr %s599, 4
      %s601 = scalar_lea.vmem %s3, %s600
      // Predicated region
      $region41: #{encoder_forward.5} parent=31 // pred_check
        %p602 = pneg %p114
      $region42: #{encoder_forward.5} parent=31 // pred_check_branch
        %604 = sbr.rel (%p602) target = $region44
      $region43: #{encoder_forward.5} parent=31 // pred_region
        %s605 = smul.u32 8, %s18
      $region44: #{encoder_forward.5} parent=31 // pred_fallthru
        _
    $region32: #{encoder_forward.5} parent=5 // pred_fallthru
      _
    %p606 = scmp.le.s32.totalorder 2, %s9
    // Predicated region
    $region45: #{encoder_forward.5} parent=5 // pred_check
      %p607 = pneg %p606
    $region46: #{encoder_forward.5} parent=5 // pred_check_branch
      %609 = sbr.rel (%p607) target = $region48
    $region47: #{encoder_forward.5} parent=5 // pred_region
      %s610 = ssub.s32 %s9, 2
      // Predicated region
      $region49: #{encoder_forward.5} parent=47 // pred_check
        %p611 = pneg %p120
      $region50: #{encoder_forward.5} parent=47 // pred_check_branch
        %613 = sbr.rel (%p611) target = $region52
      $region51: #{encoder_forward.5} parent=47 // pred_region
        %s614 = smul.u32 8, %s20
        %p615 = scmp.lt.s32.totalorder %s614, 15
        %s616 = scalar_select %p615, %s614, 15
        %s617 = smul.addr %s616, 4
        %s618 = scalar_lea.vmem %s3, %s617
      $region52: #{encoder_forward.5} parent=47 // pred_fallthru
        _
    $region48: #{encoder_forward.5} parent=5 // pred_fallthru
      _
  $region6: #{encoder_forward.5} parent=0 // loop_footer
    %s13 = sadd.s32 1, %s9
  $region7: #{encoder_forward.5} parent=0 // loop_footer_branch
    %8 = sbr.rel target = $region3
  $region8: #{encoder_forward.5} parent=0 // loop_exit
    _

</llo_original>
